<compile_context>
chip_gen: v7x
topology: tpu7x:2x2x1
jax: 0.10.0
libtpu: 0.0.40
codegen_flags: <defaults>
</compile_context>

<pallas_src>
import functools
import math

import jax
import jax.numpy as jnp
from jax import lax
from jax.experimental import pallas as pl
from jax.experimental.pallas import tpu as pltpu

HALF = jnp.bfloat16
_NEG_BIG = jnp.float32(-1e30)
_MAX_KEY_TILE = 512
_VMEM_BUDGET = 32 << 20        # target working set; limit gets 2x headroom


def _vmem_estimate(tk, n2, dim, inner, heads):
    """Rough VMEM bytes for one grid step (double-buffered blocks + scratch)."""
    bf, f32 = 2, 4
    est = 0
    est += 2 * tk * dim * bf                                   # x key tile
    est += 2 * n2 * dim * bf                                   # latents block
    est += 2 * (dim * inner + dim * 2 * inner + inner * dim) * bf   # weights
    est += 2 * n2 * dim * bf                                   # output block
    est += n2 * inner * bf                                     # q scratch
    est += n2 * inner * f32                                    # acc scratch
    est += 2 * heads * n2 * 128 * f32                          # m / l (lane-padded)
    est += tk * 2 * inner * (bf + f32)                         # kv tile + f32 temp
    est += 4 * n2 * tk * f32                                   # score / exp temps
    return est


def _attn_kernel(x_ref, lat_ref, wq_ref, wkv_ref, wo_ref, o_ref,
                 q_sc, m_sc, l_sc, acc_sc, *, heads, dim_head, n1, padded):
    """Grid = (batch, key-tiles); online softmax over the key tiles.

    ti == 0      : latent-side projections + init of m/l/acc from latent keys.
    every ti     : project one x key/value tile, per-head online update.
    ti == last   : normalize, stitch heads along lanes, one to_out GEMM.
    """
    ti = pl.program_id(1)
    nt = pl.num_programs(1)
    inner = heads * dim_head
    contract = (((1,), (1,)), ((), ()))          # q @ k^T (contract last dims)

    wkv = wkv_ref[...]                           # (D, 2*inner), scale in K half

    @pl.when(ti == 0)
    def _init():
        lat = lat_ref[0]                                               # (n2, D)
        q = jnp.dot(lat, wq_ref[...],
                    preferred_element_type=jnp.float32).astype(HALF)   # (n2, inner)
        q_sc[...] = q
        kvl = jnp.dot(lat, wkv,
                      preferred_element_type=jnp.float32).astype(HALF) # (n2, 2*inner)
        for h in range(heads):                       # heads small -> static unroll
            sl_k = slice(h * dim_head, (h + 1) * dim_head)
            sl_v = slice(inner + h * dim_head, inner + (h + 1) * dim_head)
            s = lax.dot_general(q[:, sl_k], kvl[:, sl_k], contract,
                                preferred_element_type=jnp.float32)    # (n2, n2)
            m = jnp.max(s, axis=-1, keepdims=True)
            e = jnp.exp(s - m)
            m_sc[h] = m
            l_sc[h] = jnp.sum(e, axis=-1, keepdims=True)
            acc_sc[h] = jnp.dot(e.astype(HALF), kvl[:, sl_v],
                                preferred_element_type=jnp.float32)    # (n2, dh)

    # ---- every step: one streamed x key/value tile ----
    xb = x_ref[0]                                                      # (tk, D)
    tk = xb.shape[0]
    kv = jnp.dot(xb, wkv,
                 preferred_element_type=jnp.float32).astype(HALF)      # (tk, 2*inner)
    q = q_sc[...]                                                      # (n2, inner)

    if padded:                                   # static: only if n1 was padded
        col = lax.broadcasted_iota(jnp.int32, (1, tk), 1)
        valid = (ti * tk + col) < n1                                   # (1, tk)

    for h in range(heads):
        sl_k = slice(h * dim_head, (h + 1) * dim_head)
        sl_v = slice(inner + h * dim_head, inner + (h + 1) * dim_head)
        s = lax.dot_general(q[:, sl_k], kv[:, sl_k], contract,
                            preferred_element_type=jnp.float32)        # (n2, tk)
        if padded:
            s = jnp.where(valid, s, _NEG_BIG)
        m_prev = m_sc[h]
        m_new = jnp.maximum(m_prev, jnp.max(s, axis=-1, keepdims=True))
        alpha = jnp.exp(m_prev - m_new)
        e = jnp.exp(s - m_new)
        l_sc[h] = alpha * l_sc[h] + jnp.sum(e, axis=-1, keepdims=True)
        acc_sc[h] = alpha * acc_sc[h] + jnp.dot(
            e.astype(HALF), kv[:, sl_v], preferred_element_type=jnp.float32)
        m_sc[h] = m_new

    @pl.when(ti == nt - 1)
    def _finalize():
        outs = []
        for h in range(heads):
            inv = pl.reciprocal(l_sc[h], approx=True)                  # EUP slot
            outs.append((acc_sc[h] * inv).astype(HALF))
        o_half = jnp.concatenate(outs, axis=-1)                        # (n2, inner)
        # Single full-inner to_out GEMM (review item: no per-head dim_head-deep GEMMs).
        o_ref[0] = jnp.dot(o_half, wo_ref[...],
                           preferred_element_type=jnp.float32).astype(o_ref.dtype)


def prepare_params(params, *, heads, dim_head):
    """One-time (load-time) weight prep: bf16 cast + softmax-scale folding."""
    inner = heads * dim_head
    scale = 1.0 / math.sqrt(math.sqrt(dim_head))                       # dim_head**-0.25
    wkv = jnp.asarray(params["to_kv"], jnp.float32)
    wkv = wkv.at[:, :inner].multiply(scale)                            # fold into K half
    return {
        "wq": (jnp.asarray(params["to_q"], jnp.float32) * scale).astype(HALF),
        "wkv": wkv.astype(HALF),
        "wo": jnp.asarray(params["to_out"], jnp.float32).astype(HALF),
    }


def perceiver_attention(x, latents, prepared, *, heads, dim_head):
    if x.ndim == 2:                              # mirrors torch x.unsqueeze(1)
        x = x[:, None, :]
    b, n1, dim = x.shape
    _, n2, _ = latents.shape
    inner = heads * dim_head

    # ---- key-axis tile selection (online softmax over n1 tiles) ----
    if n1 <= _MAX_KEY_TILE:
        tk = n1                                  # single tile, full extent
    else:
        tk = _MAX_KEY_TILE
        while tk > 128 and _vmem_estimate(tk, n2, dim, inner, heads) > _VMEM_BUDGET:
            tk //= 2
    n1_pad = -(-n1 // tk) * tk
    nt = n1_pad // tk
    padded = n1_pad != n1

    x_h = x.astype(HALF)
    lat_h = latents.astype(HALF)
    if padded:
        x_h = jnp.pad(x_h, ((0, 0), (0, n1_pad - n1), (0, 0)))

    est = _vmem_estimate(tk, n2, dim, inner, heads)
    vmem_limit = int(min(max(2 * est, 16 << 20), 64 << 20))

    kernel = functools.partial(_attn_kernel, heads=heads, dim_head=dim_head,
                               n1=n1, padded=padded)

    return pl.pallas_call(
        kernel,
        out_shape=jax.ShapeDtypeStruct((b, n2, dim), HALF),
        grid_spec=pltpu.PrefetchScalarGridSpec(
            num_scalar_prefetch=0,
            grid=(b, nt),                        # batch parallel, key tiles reduced
            in_specs=[
                pl.BlockSpec((1, tk, dim), lambda bi, ti: (bi, ti, 0)),     # x tile
                pl.BlockSpec((1, n2, dim), lambda bi, ti: (bi, 0, 0)),      # latents
                pl.BlockSpec((dim, inner), lambda bi, ti: (0, 0)),          # wq
                pl.BlockSpec((dim, 2 * inner), lambda bi, ti: (0, 0)),      # wkv
                pl.BlockSpec((inner, dim), lambda bi, ti: (0, 0)),          # wo
            ],
            out_specs=pl.BlockSpec((1, n2, dim), lambda bi, ti: (bi, 0, 0)),
            scratch_shapes=[
                pltpu.VMEM((n2, inner), HALF),                  # q (resident)
                pltpu.VMEM((heads, n2, 1), jnp.float32),        # running max m
                pltpu.VMEM((heads, n2, 1), jnp.float32),        # running sum l
                pltpu.VMEM((heads, n2, dim_head), jnp.float32), # running acc
            ],
        ),
        compiler_params=pltpu.CompilerParams(
            dimension_semantics=("parallel", "arbitrary"),
            vmem_limit_bytes=vmem_limit),
    )(x_h, lat_h, prepared["wq"], prepared["wkv"], prepared["wo"])


def _reference(x, latents, params, heads, dim_head):
    """Pure-JAX mirror of the torch forward (correctness check)."""
    b, n2, dim = latents.shape
    inner = heads * dim_head
    lat = latents.astype(HALF)
    kvi = jnp.concatenate([x.astype(HALF), lat], axis=1)
    q = jnp.dot(lat, params["to_q"].astype(HALF),
                preferred_element_type=jnp.float32).astype(HALF)
    kvp = jnp.dot(kvi, params["to_kv"].astype(HALF),
                  preferred_element_type=jnp.float32).astype(HALF)
    k, v = kvp[..., :inner], kvp[..., inner:]

    def split(t):
        bb, ll, _ = t.shape
        return jnp.transpose(t.reshape(bb, ll, heads, dim_head), (0, 2, 1, 3))

    q, k, v = split(q), split(k), split(v)
    scale = 1.0 / math.sqrt(math.sqrt(dim_head))
    w = jnp.einsum("bhqd,bhkd->bhqk", (q * scale).astype(HALF),
                   (k * scale).astype(HALF),
                   preferred_element_type=jnp.float32)
    w = jax.nn.softmax(w.astype(jnp.float32), axis=-1).astype(HALF)
    o = jnp.einsum("bhqk,bhkd->bhqd", w, v,
                   preferred_element_type=jnp.float32).astype(HALF)
    o = jnp.transpose(o, (0, 2, 1, 3)).reshape(b, n2, inner)
    return jnp.dot(o, params["to_out"].astype(HALF),
                   preferred_element_type=jnp.float32).astype(HALF)


if __name__ == "__main__":
    dim, dim_head, heads = 32, 16, 4
    b, n1, n2 = 2, 16, 8
    inner = dim_head * heads

    key = jax.random.PRNGKey(0)
    k1, k2, k3, k4, k5 = jax.random.split(key, 5)
    params = {
        "to_q":   jax.random.normal(k1, (dim, inner), jnp.float32) / math.sqrt(dim),
        "to_kv":  jax.random.normal(k2, (dim, 2 * inner), jnp.float32) / math.sqrt(dim),
        "to_out": jax.random.normal(k3, (inner, dim), jnp.float32) / math.sqrt(inner),
    }
    x = jax.random.normal(k4, (b, n1, dim), jnp.float32)
    latents = jax.random.normal(k5, (b, n2, dim), jnp.float32)

    prepared = prepare_params(params, heads=heads, dim_head=dim_head)   # one-time
    out = perceiver_attention(x, latents, prepared, heads=heads, dim_head=dim_head)
    out = jax.block_until_ready(out)

    ref = _reference(x, latents, params, heads, dim_head)
    assert out.shape == (b, n2, dim), out.shape
    assert out.dtype == HALF, out.dtype
    err = float(jnp.max(jnp.abs(out.astype(jnp.float32) - ref.astype(jnp.float32))))
    assert err < 1.5e-1, f"mismatch, max abs err = {err}"
    print("KERNEL_OK")
</pallas_src>

<mosaic_0001>
module attributes {stable_mosaic.version = 11 : i64} {
  func.func @_attn_kernel(%arg0: i32, %arg1: i32, %arg2: memref<1x16x32xbf16, #tpu.memory_space<vmem>>, %arg3: memref<1x8x32xbf16, #tpu.memory_space<vmem>>, %arg4: memref<32x64xbf16, #tpu.memory_space<vmem>>, %arg5: memref<32x128xbf16, #tpu.memory_space<vmem>>, %arg6: memref<64x32xbf16, #tpu.memory_space<vmem>>, %arg7: memref<1x8x32xbf16, #tpu.memory_space<vmem>>, %arg8: memref<8x64xbf16, #tpu.memory_space<vmem>>, %arg9: memref<4x8x1xf32, #tpu.memory_space<vmem>>, %arg10: memref<4x8x1xf32, #tpu.memory_space<vmem>>, %arg11: memref<4x8x16xf32, #tpu.memory_space<vmem>>) attributes {dimension_semantics = [#tpu.dimension_semantics<parallel>, #tpu.dimension_semantics<arbitrary>], iteration_bounds = array<i64: 2, 1>, scalar_prefetch = 0 : i64, scratch_operands = 4 : i64, tpu.core_type = #tpu.core_type<tc>, window_params = [{transform_indices = @transform_0, window_bounds = array<i64: 1, 16, 32>}, {transform_indices = @transform_1, window_bounds = array<i64: 1, 8, 32>}, {pipeline_mode = #tpu.pipeline_mode<synchronous>, transform_indices = @transform_2, window_bounds = array<i64: 32, 64>}, {pipeline_mode = #tpu.pipeline_mode<synchronous>, transform_indices = @transform_3, window_bounds = array<i64: 32, 128>}, {pipeline_mode = #tpu.pipeline_mode<synchronous>, transform_indices = @transform_4, window_bounds = array<i64: 64, 32>}, {transform_indices = @transform_5, window_bounds = array<i64: 1, 8, 32>}]} {
    %c0 = arith.constant 0 : index
    %c0_0 = arith.constant 0 : index
    %0 = vector.load %arg5[%c0, %c0_0] : memref<32x128xbf16, #tpu.memory_space<vmem>>, vector<32x128xbf16>
    %c0_i32 = arith.constant 0 : i32
    %1 = arith.cmpi eq, %arg1, %c0_i32 : i32
    %2 = arith.extui %1 : i1 to i32
    %c0_i32_1 = arith.constant 0 : i32
    %3 = arith.cmpi ne, %2, %c0_i32_1 : i32
    scf.if %3 {
      %c0_94 = arith.constant 0 : index
      %c0_95 = arith.constant 0 : index
      %c0_96 = arith.constant 0 : index
      %156 = vector.load %arg3[%c0_94, %c0_95, %c0_96] : memref<1x8x32xbf16, #tpu.memory_space<vmem>>, vector<1x8x32xbf16>
      %157 = vector.shape_cast %156 : vector<1x8x32xbf16> to vector<8x32xbf16>
      %c0_97 = arith.constant 0 : index
      %c0_98 = arith.constant 0 : index
      %158 = vector.load %arg4[%c0_97, %c0_98] : memref<32x64xbf16, #tpu.memory_space<vmem>>, vector<32x64xbf16>
      %cst_99 = arith.constant dense<0.000000e+00> : vector<8x64xf32>
      %159 = tpu.matmul %157, %158, %cst_99 {dimension_numbers = #tpu.dot_dimension_numbers<[1], [0], [0], [1], [0, 0, 1, 1], [], []>} : vector<8x32xbf16>, vector<32x64xbf16>, vector<8x64xf32> -> vector<8x64xf32>
      %160 = arith.truncf %159 : vector<8x64xf32> to vector<8x64xbf16>
      %c0_100 = arith.constant 0 : index
      %c0_101 = arith.constant 0 : index
      %161 = vector.load %arg8[%c0_100, %c0_101] : memref<8x64xbf16, #tpu.memory_space<vmem>>, vector<8x64xbf16>
      tpu.vector_store %arg8[%c0_100, %c0_101], %160 {strides = array<i32>} : memref<8x64xbf16, #tpu.memory_space<vmem>>, vector<8x64xbf16>,
      %cst_102 = arith.constant dense<0.000000e+00> : vector<8x128xf32>
      %162 = tpu.matmul %157, %0, %cst_102 {dimension_numbers = #tpu.dot_dimension_numbers<[1], [0], [0], [1], [0, 0, 1, 1], [], []>} : vector<8x32xbf16>, vector<32x128xbf16>, vector<8x128xf32> -> vector<8x128xf32>
      %163 = arith.truncf %162 : vector<8x128xf32> to vector<8x128xbf16>
      %164 = vector.extract_strided_slice %160 {offsets = [0, 0], sizes = [8, 16], strides = [1, 1]} : vector<8x64xbf16> to vector<8x16xbf16>
      %165 = vector.extract_strided_slice %163 {offsets = [0, 0], sizes = [8, 16], strides = [1, 1]} : vector<8x128xbf16> to vector<8x16xbf16>
      %cst_103 = arith.constant dense<0.000000e+00> : vector<8x8xf32>
      %166 = tpu.matmul %164, %165, %cst_103 {dimension_numbers = #tpu.dot_dimension_numbers<[1], [1], [0], [0], [0, 0, 1, 0], [], []>} : vector<8x16xbf16>, vector<8x16xbf16>, vector<8x8xf32> -> vector<8x8xf32>
      %cst_104 = arith.constant dense<0xFF800000> : vector<8xf32>
      %167 = vector.multi_reduction <maximumf>, %166, %cst_104 [1] : vector<8x8xf32> to vector<8xf32>
      %168 = vector.shape_cast %167 : vector<8xf32> to vector<8x1xf32>
      %169 = vector.broadcast %168 : vector<8x1xf32> to vector<8x8xf32>
      %170 = arith.subf %166, %169 : vector<8x8xf32>
      %171 = math.exp %170 : vector<8x8xf32>
      %c0_105 = arith.constant 0 : index
      %c0_106 = arith.constant 0 : index
      %c0_107 = arith.constant 0 : index
      %172 = vector.load %arg9[%c0_105, %c0_106, %c0_107] : memref<4x8x1xf32, #tpu.memory_space<vmem>>, vector<1x8x1xf32>
      %173 = vector.shape_cast %172 : vector<1x8x1xf32> to vector<8x1xf32>
      %174 = vector.shape_cast %168 : vector<8x1xf32> to vector<1x8x1xf32>
      tpu.vector_store %arg9[%c0_105, %c0_106, %c0_107], %174 {strides = array<i32>} : memref<4x8x1xf32, #tpu.memory_space<vmem>>, vector<1x8x1xf32>,
      %cst_108 = arith.constant dense<0.000000e+00> : vector<8xf32>
      %175 = vector.multi_reduction <add>, %171, %cst_108 [1] : vector<8x8xf32> to vector<8xf32>
      %176 = vector.shape_cast %175 : vector<8xf32> to vector<8x1xf32>
      %c0_109 = arith.constant 0 : index
      %c0_110 = arith.constant 0 : index
      %c0_111 = arith.constant 0 : index
      %177 = vector.load %arg10[%c0_109, %c0_110, %c0_111] : memref<4x8x1xf32, #tpu.memory_space<vmem>>, vector<1x8x1xf32>
      %178 = vector.shape_cast %177 : vector<1x8x1xf32> to vector<8x1xf32>
      %179 = vector.shape_cast %176 : vector<8x1xf32> to vector<1x8x1xf32>
      tpu.vector_store %arg10[%c0_109, %c0_110, %c0_111], %179 {strides = array<i32>} : memref<4x8x1xf32, #tpu.memory_space<vmem>>, vector<1x8x1xf32>,
      %180 = arith.truncf %171 : vector<8x8xf32> to vector<8x8xbf16>
      %181 = vector.extract_strided_slice %163 {offsets = [0, 64], sizes = [8, 16], strides = [1, 1]} : vector<8x128xbf16> to vector<8x16xbf16>
      %cst_112 = arith.constant dense<0.000000e+00> : vector<8x16xf32>
      %182 = tpu.matmul %180, %181, %cst_112 {dimension_numbers = #tpu.dot_dimension_numbers<[1], [0], [0], [1], [0, 0, 1, 1], [], []>} : vector<8x8xbf16>, vector<8x16xbf16>, vector<8x16xf32> -> vector<8x16xf32>
      %c0_113 = arith.constant 0 : index
      %c0_114 = arith.constant 0 : index
      %c0_115 = arith.constant 0 : index
      %183 = vector.load %arg11[%c0_113, %c0_114, %c0_115] : memref<4x8x16xf32, #tpu.memory_space<vmem>>, vector<1x8x16xf32>
      %184 = vector.shape_cast %183 : vector<1x8x16xf32> to vector<8x16xf32>
      %185 = vector.shape_cast %182 : vector<8x16xf32> to vector<1x8x16xf32>
      tpu.vector_store %arg11[%c0_113, %c0_114, %c0_115], %185 {strides = array<i32>} : memref<4x8x16xf32, #tpu.memory_space<vmem>>, vector<1x8x16xf32>,
      %186 = vector.extract_strided_slice %160 {offsets = [0, 16], sizes = [8, 16], strides = [1, 1]} : vector<8x64xbf16> to vector<8x16xbf16>
      %187 = vector.extract_strided_slice %163 {offsets = [0, 16], sizes = [8, 16], strides = [1, 1]} : vector<8x128xbf16> to vector<8x16xbf16>
      %cst_116 = arith.constant dense<0.000000e+00> : vector<8x8xf32>
      %188 = tpu.matmul %186, %187, %cst_116 {dimension_numbers = #tpu.dot_dimension_numbers<[1], [1], [0], [0], [0, 0, 1, 0], [], []>} : vector<8x16xbf16>, vector<8x16xbf16>, vector<8x8xf32> -> vector<8x8xf32>
      %cst_117 = arith.constant dense<0xFF800000> : vector<8xf32>
      %189 = vector.multi_reduction <maximumf>, %188, %cst_117 [1] : vector<8x8xf32> to vector<8xf32>
      %190 = vector.shape_cast %189 : vector<8xf32> to vector<8x1xf32>
      %191 = vector.broadcast %190 : vector<8x1xf32> to vector<8x8xf32>
      %192 = arith.subf %188, %191 : vector<8x8xf32>
      %193 = math.exp %192 : vector<8x8xf32>
      %c1_118 = arith.constant 1 : index
      %c0_119 = arith.constant 0 : index
      %c0_120 = arith.constant 0 : index
      %194 = vector.load %arg9[%c1_118, %c0_119, %c0_120] : memref<4x8x1xf32, #tpu.memory_space<vmem>>, vector<1x8x1xf32>
      %195 = vector.shape_cast %194 : vector<1x8x1xf32> to vector<8x1xf32>
      %196 = vector.shape_cast %190 : vector<8x1xf32> to vector<1x8x1xf32>
      tpu.vector_store %arg9[%c1_118, %c0_119, %c0_120], %196 {strides = array<i32>} : memref<4x8x1xf32, #tpu.memory_space<vmem>>, vector<1x8x1xf32>,
      %cst_121 = arith.constant dense<0.000000e+00> : vector<8xf32>
      %197 = vector.multi_reduction <add>, %193, %cst_121 [1] : vector<8x8xf32> to vector<8xf32>
      %198 = vector.shape_cast %197 : vector<8xf32> to vector<8x1xf32>
      %c1_122 = arith.constant 1 : index
      %c0_123 = arith.constant 0 : index
      %c0_124 = arith.constant 0 : index
      %199 = vector.load %arg10[%c1_122, %c0_123, %c0_124] : memref<4x8x1xf32, #tpu.memory_space<vmem>>, vector<1x8x1xf32>
      %200 = vector.shape_cast %199 : vector<1x8x1xf32> to vector<8x1xf32>
      %201 = vector.shape_cast %198 : vector<8x1xf32> to vector<1x8x1xf32>
      tpu.vector_store %arg10[%c1_122, %c0_123, %c0_124], %201 {strides = array<i32>} : memref<4x8x1xf32, #tpu.memory_space<vmem>>, vector<1x8x1xf32>,
      %202 = arith.truncf %193 : vector<8x8xf32> to vector<8x8xbf16>
      %203 = vector.extract_strided_slice %163 {offsets = [0, 80], sizes = [8, 16], strides = [1, 1]} : vector<8x128xbf16> to vector<8x16xbf16>
      %cst_125 = arith.constant dense<0.000000e+00> : vector<8x16xf32>
      %204 = tpu.matmul %202, %203, %cst_125 {dimension_numbers = #tpu.dot_dimension_numbers<[1], [0], [0], [1], [0, 0, 1, 1], [], []>} : vector<8x8xbf16>, vector<8x16xbf16>, vector<8x16xf32> -> vector<8x16xf32>
      %c1_126 = arith.constant 1 : index
      %c0_127 = arith.constant 0 : index
      %c0_128 = arith.constant 0 : index
      %205 = vector.load %arg11[%c1_126, %c0_127, %c0_128] : memref<4x8x16xf32, #tpu.memory_space<vmem>>, vector<1x8x16xf32>
      %206 = vector.shape_cast %205 : vector<1x8x16xf32> to vector<8x16xf32>
      %207 = vector.shape_cast %204 : vector<8x16xf32> to vector<1x8x16xf32>
      tpu.vector_store %arg11[%c1_126, %c0_127, %c0_128], %207 {strides = array<i32>} : memref<4x8x16xf32, #tpu.memory_space<vmem>>, vector<1x8x16xf32>,
      %208 = vector.extract_strided_slice %160 {offsets = [0, 32], sizes = [8, 16], strides = [1, 1]} : vector<8x64xbf16> to vector<8x16xbf16>
      %209 = vector.extract_strided_slice %163 {offsets = [0, 32], sizes = [8, 16], strides = [1, 1]} : vector<8x128xbf16> to vector<8x16xbf16>
      %cst_129 = arith.constant dense<0.000000e+00> : vector<8x8xf32>
      %210 = tpu.matmul %208, %209, %cst_129 {dimension_numbers = #tpu.dot_dimension_numbers<[1], [1], [0], [0], [0, 0, 1, 0], [], []>} : vector<8x16xbf16>, vector<8x16xbf16>, vector<8x8xf32> -> vector<8x8xf32>
      %cst_130 = arith.constant dense<0xFF800000> : vector<8xf32>
      %211 = vector.multi_reduction <maximumf>, %210, %cst_130 [1] : vector<8x8xf32> to vector<8xf32>
      %212 = vector.shape_cast %211 : vector<8xf32> to vector<8x1xf32>
      %213 = vector.broadcast %212 : vector<8x1xf32> to vector<8x8xf32>
      %214 = arith.subf %210, %213 : vector<8x8xf32>
      %215 = math.exp %214 : vector<8x8xf32>
      %c2_131 = arith.constant 2 : index
      %c0_132 = arith.constant 0 : index
      %c0_133 = arith.constant 0 : index
      %216 = vector.load %arg9[%c2_131, %c0_132, %c0_133] : memref<4x8x1xf32, #tpu.memory_space<vmem>>, vector<1x8x1xf32>
      %217 = vector.shape_cast %216 : vector<1x8x1xf32> to vector<8x1xf32>
      %218 = vector.shape_cast %212 : vector<8x1xf32> to vector<1x8x1xf32>
      tpu.vector_store %arg9[%c2_131, %c0_132, %c0_133], %218 {strides = array<i32>} : memref<4x8x1xf32, #tpu.memory_space<vmem>>, vector<1x8x1xf32>,
      %cst_134 = arith.constant dense<0.000000e+00> : vector<8xf32>
      %219 = vector.multi_reduction <add>, %215, %cst_134 [1] : vector<8x8xf32> to vector<8xf32>
      %220 = vector.shape_cast %219 : vector<8xf32> to vector<8x1xf32>
      %c2_135 = arith.constant 2 : index
      %c0_136 = arith.constant 0 : index
      %c0_137 = arith.constant 0 : index
      %221 = vector.load %arg10[%c2_135, %c0_136, %c0_137] : memref<4x8x1xf32, #tpu.memory_space<vmem>>, vector<1x8x1xf32>
      %222 = vector.shape_cast %221 : vector<1x8x1xf32> to vector<8x1xf32>
      %223 = vector.shape_cast %220 : vector<8x1xf32> to vector<1x8x1xf32>
      tpu.vector_store %arg10[%c2_135, %c0_136, %c0_137], %223 {strides = array<i32>} : memref<4x8x1xf32, #tpu.memory_space<vmem>>, vector<1x8x1xf32>,
      %224 = arith.truncf %215 : vector<8x8xf32> to vector<8x8xbf16>
      %225 = vector.extract_strided_slice %163 {offsets = [0, 96], sizes = [8, 16], strides = [1, 1]} : vector<8x128xbf16> to vector<8x16xbf16>
      %cst_138 = arith.constant dense<0.000000e+00> : vector<8x16xf32>
      %226 = tpu.matmul %224, %225, %cst_138 {dimension_numbers = #tpu.dot_dimension_numbers<[1], [0], [0], [1], [0, 0, 1, 1], [], []>} : vector<8x8xbf16>, vector<8x16xbf16>, vector<8x16xf32> -> vector<8x16xf32>
      %c2_139 = arith.constant 2 : index
      %c0_140 = arith.constant 0 : index
      %c0_141 = arith.constant 0 : index
      %227 = vector.load %arg11[%c2_139, %c0_140, %c0_141] : memref<4x8x16xf32, #tpu.memory_space<vmem>>, vector<1x8x16xf32>
      %228 = vector.shape_cast %227 : vector<1x8x16xf32> to vector<8x16xf32>
      %229 = vector.shape_cast %226 : vector<8x16xf32> to vector<1x8x16xf32>
      tpu.vector_store %arg11[%c2_139, %c0_140, %c0_141], %229 {strides = array<i32>} : memref<4x8x16xf32, #tpu.memory_space<vmem>>, vector<1x8x16xf32>,
      %230 = vector.extract_strided_slice %160 {offsets = [0, 48], sizes = [8, 16], strides = [1, 1]} : vector<8x64xbf16> to vector<8x16xbf16>
      %231 = vector.extract_strided_slice %163 {offsets = [0, 48], sizes = [8, 16], strides = [1, 1]} : vector<8x128xbf16> to vector<8x16xbf16>
      %cst_142 = arith.constant dense<0.000000e+00> : vector<8x8xf32>
      %232 = tpu.matmul %230, %231, %cst_142 {dimension_numbers = #tpu.dot_dimension_numbers<[1], [1], [0], [0], [0, 0, 1, 0], [], []>} : vector<8x16xbf16>, vector<8x16xbf16>, vector<8x8xf32> -> vector<8x8xf32>
      %cst_143 = arith.constant dense<0xFF800000> : vector<8xf32>
      %233 = vector.multi_reduction <maximumf>, %232, %cst_143 [1] : vector<8x8xf32> to vector<8xf32>
      %234 = vector.shape_cast %233 : vector<8xf32> to vector<8x1xf32>
      %235 = vector.broadcast %234 : vector<8x1xf32> to vector<8x8xf32>
      %236 = arith.subf %232, %235 : vector<8x8xf32>
      %237 = math.exp %236 : vector<8x8xf32>
      %c3_144 = arith.constant 3 : index
      %c0_145 = arith.constant 0 : index
      %c0_146 = arith.constant 0 : index
      %238 = vector.load %arg9[%c3_144, %c0_145, %c0_146] : memref<4x8x1xf32, #tpu.memory_space<vmem>>, vector<1x8x1xf32>
      %239 = vector.shape_cast %238 : vector<1x8x1xf32> to vector<8x1xf32>
      %240 = vector.shape_cast %234 : vector<8x1xf32> to vector<1x8x1xf32>
      tpu.vector_store %arg9[%c3_144, %c0_145, %c0_146], %240 {strides = array<i32>} : memref<4x8x1xf32, #tpu.memory_space<vmem>>, vector<1x8x1xf32>,
      %cst_147 = arith.constant dense<0.000000e+00> : vector<8xf32>
      %241 = vector.multi_reduction <add>, %237, %cst_147 [1] : vector<8x8xf32> to vector<8xf32>
      %242 = vector.shape_cast %241 : vector<8xf32> to vector<8x1xf32>
      %c3_148 = arith.constant 3 : index
      %c0_149 = arith.constant 0 : index
      %c0_150 = arith.constant 0 : index
      %243 = vector.load %arg10[%c3_148, %c0_149, %c0_150] : memref<4x8x1xf32, #tpu.memory_space<vmem>>, vector<1x8x1xf32>
      %244 = vector.shape_cast %243 : vector<1x8x1xf32> to vector<8x1xf32>
      %245 = vector.shape_cast %242 : vector<8x1xf32> to vector<1x8x1xf32>
      tpu.vector_store %arg10[%c3_148, %c0_149, %c0_150], %245 {strides = array<i32>} : memref<4x8x1xf32, #tpu.memory_space<vmem>>, vector<1x8x1xf32>,
      %246 = arith.truncf %237 : vector<8x8xf32> to vector<8x8xbf16>
      %247 = vector.extract_strided_slice %163 {offsets = [0, 112], sizes = [8, 16], strides = [1, 1]} : vector<8x128xbf16> to vector<8x16xbf16>
      %cst_151 = arith.constant dense<0.000000e+00> : vector<8x16xf32>
      %248 = tpu.matmul %246, %247, %cst_151 {dimension_numbers = #tpu.dot_dimension_numbers<[1], [0], [0], [1], [0, 0, 1, 1], [], []>} : vector<8x8xbf16>, vector<8x16xbf16>, vector<8x16xf32> -> vector<8x16xf32>
      %c3_152 = arith.constant 3 : index
      %c0_153 = arith.constant 0 : index
      %c0_154 = arith.constant 0 : index
      %249 = vector.load %arg11[%c3_152, %c0_153, %c0_154] : memref<4x8x16xf32, #tpu.memory_space<vmem>>, vector<1x8x16xf32>
      %250 = vector.shape_cast %249 : vector<1x8x16xf32> to vector<8x16xf32>
      %251 = vector.shape_cast %248 : vector<8x16xf32> to vector<1x8x16xf32>
      tpu.vector_store %arg11[%c3_152, %c0_153, %c0_154], %251 {strides = array<i32>} : memref<4x8x16xf32, #tpu.memory_space<vmem>>, vector<1x8x16xf32>,
    } else {
    }
    %c0_2 = arith.constant 0 : index
    %c0_3 = arith.constant 0 : index
    %c0_4 = arith.constant 0 : index
    %4 = vector.load %arg2[%c0_2, %c0_3, %c0_4] : memref<1x16x32xbf16, #tpu.memory_space<vmem>>, vector<1x16x32xbf16>
    %5 = vector.shape_cast %4 : vector<1x16x32xbf16> to vector<16x32xbf16>
    %cst = arith.constant dense<0.000000e+00> : vector<16x128xf32>
    %6 = tpu.matmul %5, %0, %cst {dimension_numbers = #tpu.dot_dimension_numbers<[1], [0], [0], [1], [0, 0, 1, 1], [], []>} : vector<16x32xbf16>, vector<32x128xbf16>, vector<16x128xf32> -> vector<16x128xf32>
    %7 = arith.truncf %6 : vector<16x128xf32> to vector<16x128xbf16>
    %c0_5 = arith.constant 0 : index
    %c0_6 = arith.constant 0 : index
    %8 = vector.load %arg8[%c0_5, %c0_6] : memref<8x64xbf16, #tpu.memory_space<vmem>>, vector<8x64xbf16>
    %9 = vector.extract_strided_slice %8 {offsets = [0, 0], sizes = [8, 16], strides = [1, 1]} : vector<8x64xbf16> to vector<8x16xbf16>
    %10 = vector.extract_strided_slice %7 {offsets = [0, 0], sizes = [16, 16], strides = [1, 1]} : vector<16x128xbf16> to vector<16x16xbf16>
    %cst_7 = arith.constant dense<0.000000e+00> : vector<8x16xf32>
    %11 = tpu.matmul %9, %10, %cst_7 {dimension_numbers = #tpu.dot_dimension_numbers<[1], [1], [0], [0], [0, 0, 1, 0], [], []>} : vector<8x16xbf16>, vector<16x16xbf16>, vector<8x16xf32> -> vector<8x16xf32>
    %c0_8 = arith.constant 0 : index
    %c0_9 = arith.constant 0 : index
    %c0_10 = arith.constant 0 : index
    %12 = vector.load %arg9[%c0_8, %c0_9, %c0_10] : memref<4x8x1xf32, #tpu.memory_space<vmem>>, vector<1x8x1xf32>
    %13 = vector.shape_cast %12 : vector<1x8x1xf32> to vector<8x1xf32>
    %cst_11 = arith.constant dense<0xFF800000> : vector<8xf32>
    %14 = vector.multi_reduction <maximumf>, %11, %cst_11 [1] : vector<8x16xf32> to vector<8xf32>
    %15 = vector.shape_cast %14 : vector<8xf32> to vector<8x1xf32>
    %16 = arith.maximumf %13, %15 : vector<8x1xf32>
    %17 = arith.subf %13, %16 : vector<8x1xf32>
    %18 = math.exp %17 : vector<8x1xf32>
    %19 = vector.broadcast %16 : vector<8x1xf32> to vector<8x16xf32>
    %20 = arith.subf %11, %19 : vector<8x16xf32>
    %21 = math.exp %20 : vector<8x16xf32>
    %c0_12 = arith.constant 0 : index
    %c0_13 = arith.constant 0 : index
    %c0_14 = arith.constant 0 : index
    %22 = vector.load %arg10[%c0_12, %c0_13, %c0_14] : memref<4x8x1xf32, #tpu.memory_space<vmem>>, vector<1x8x1xf32>
    %23 = vector.shape_cast %22 : vector<1x8x1xf32> to vector<8x1xf32>
    %24 = arith.mulf %18, %23 : vector<8x1xf32>
    %cst_15 = arith.constant dense<0.000000e+00> : vector<8xf32>
    %25 = vector.multi_reduction <add>, %21, %cst_15 [1] : vector<8x16xf32> to vector<8xf32>
    %26 = vector.shape_cast %25 : vector<8xf32> to vector<8x1xf32>
    %27 = arith.addf %24, %26 : vector<8x1xf32>
    %c0_16 = arith.constant 0 : index
    %c0_17 = arith.constant 0 : index
    %c0_18 = arith.constant 0 : index
    %28 = vector.load %arg10[%c0_16, %c0_17, %c0_18] : memref<4x8x1xf32, #tpu.memory_space<vmem>>, vector<1x8x1xf32>
    %29 = vector.shape_cast %28 : vector<1x8x1xf32> to vector<8x1xf32>
    %30 = vector.shape_cast %27 : vector<8x1xf32> to vector<1x8x1xf32>
    tpu.vector_store %arg10[%c0_16, %c0_17, %c0_18], %30 {strides = array<i32>} : memref<4x8x1xf32, #tpu.memory_space<vmem>>, vector<1x8x1xf32>,
    %c0_19 = arith.constant 0 : index
    %c0_20 = arith.constant 0 : index
    %c0_21 = arith.constant 0 : index
    %31 = vector.load %arg11[%c0_19, %c0_20, %c0_21] : memref<4x8x16xf32, #tpu.memory_space<vmem>>, vector<1x8x16xf32>
    %32 = vector.shape_cast %31 : vector<1x8x16xf32> to vector<8x16xf32>
    %33 = vector.broadcast %18 : vector<8x1xf32> to vector<8x16xf32>
    %34 = arith.mulf %33, %32 : vector<8x16xf32>
    %35 = arith.truncf %21 : vector<8x16xf32> to vector<8x16xbf16>
    %36 = vector.extract_strided_slice %7 {offsets = [0, 64], sizes = [16, 16], strides = [1, 1]} : vector<16x128xbf16> to vector<16x16xbf16>
    %cst_22 = arith.constant dense<0.000000e+00> : vector<8x16xf32>
    %37 = tpu.matmul %35, %36, %cst_22 {dimension_numbers = #tpu.dot_dimension_numbers<[1], [0], [0], [1], [0, 0, 1, 1], [], []>} : vector<8x16xbf16>, vector<16x16xbf16>, vector<8x16xf32> -> vector<8x16xf32>
    %38 = arith.addf %34, %37 : vector<8x16xf32>
    %c0_23 = arith.constant 0 : index
    %c0_24 = arith.constant 0 : index
    %c0_25 = arith.constant 0 : index
    %39 = vector.load %arg11[%c0_23, %c0_24, %c0_25] : memref<4x8x16xf32, #tpu.memory_space<vmem>>, vector<1x8x16xf32>
    %40 = vector.shape_cast %39 : vector<1x8x16xf32> to vector<8x16xf32>
    %41 = vector.shape_cast %38 : vector<8x16xf32> to vector<1x8x16xf32>
    tpu.vector_store %arg11[%c0_23, %c0_24, %c0_25], %41 {strides = array<i32>} : memref<4x8x16xf32, #tpu.memory_space<vmem>>, vector<1x8x16xf32>,
    %c0_26 = arith.constant 0 : index
    %c0_27 = arith.constant 0 : index
    %c0_28 = arith.constant 0 : index
    %42 = vector.load %arg9[%c0_26, %c0_27, %c0_28] : memref<4x8x1xf32, #tpu.memory_space<vmem>>, vector<1x8x1xf32>
    %43 = vector.shape_cast %42 : vector<1x8x1xf32> to vector<8x1xf32>
    %44 = vector.shape_cast %16 : vector<8x1xf32> to vector<1x8x1xf32>
    tpu.vector_store %arg9[%c0_26, %c0_27, %c0_28], %44 {strides = array<i32>} : memref<4x8x1xf32, #tpu.memory_space<vmem>>, vector<1x8x1xf32>,
    %45 = vector.extract_strided_slice %8 {offsets = [0, 16], sizes = [8, 16], strides = [1, 1]} : vector<8x64xbf16> to vector<8x16xbf16>
    %46 = vector.extract_strided_slice %7 {offsets = [0, 16], sizes = [16, 16], strides = [1, 1]} : vector<16x128xbf16> to vector<16x16xbf16>
    %cst_29 = arith.constant dense<0.000000e+00> : vector<8x16xf32>
    %47 = tpu.matmul %45, %46, %cst_29 {dimension_numbers = #tpu.dot_dimension_numbers<[1], [1], [0], [0], [0, 0, 1, 0], [], []>} : vector<8x16xbf16>, vector<16x16xbf16>, vector<8x16xf32> -> vector<8x16xf32>
    %c1 = arith.constant 1 : index
    %c0_30 = arith.constant 0 : index
    %c0_31 = arith.constant 0 : index
    %48 = vector.load %arg9[%c1, %c0_30, %c0_31] : memref<4x8x1xf32, #tpu.memory_space<vmem>>, vector<1x8x1xf32>
    %49 = vector.shape_cast %48 : vector<1x8x1xf32> to vector<8x1xf32>
    %cst_32 = arith.constant dense<0xFF800000> : vector<8xf32>
    %50 = vector.multi_reduction <maximumf>, %47, %cst_32 [1] : vector<8x16xf32> to vector<8xf32>
    %51 = vector.shape_cast %50 : vector<8xf32> to vector<8x1xf32>
    %52 = arith.maximumf %49, %51 : vector<8x1xf32>
    %53 = arith.subf %49, %52 : vector<8x1xf32>
    %54 = math.exp %53 : vector<8x1xf32>
    %55 = vector.broadcast %52 : vector<8x1xf32> to vector<8x16xf32>
    %56 = arith.subf %47, %55 : vector<8x16xf32>
    %57 = math.exp %56 : vector<8x16xf32>
    %c1_33 = arith.constant 1 : index
    %c0_34 = arith.constant 0 : index
    %c0_35 = arith.constant 0 : index
    %58 = vector.load %arg10[%c1_33, %c0_34, %c0_35] : memref<4x8x1xf32, #tpu.memory_space<vmem>>, vector<1x8x1xf32>
    %59 = vector.shape_cast %58 : vector<1x8x1xf32> to vector<8x1xf32>
    %60 = arith.mulf %54, %59 : vector<8x1xf32>
    %cst_36 = arith.constant dense<0.000000e+00> : vector<8xf32>
    %61 = vector.multi_reduction <add>, %57, %cst_36 [1] : vector<8x16xf32> to vector<8xf32>
    %62 = vector.shape_cast %61 : vector<8xf32> to vector<8x1xf32>
    %63 = arith.addf %60, %62 : vector<8x1xf32>
    %c1_37 = arith.constant 1 : index
    %c0_38 = arith.constant 0 : index
    %c0_39 = arith.constant 0 : index
    %64 = vector.load %arg10[%c1_37, %c0_38, %c0_39] : memref<4x8x1xf32, #tpu.memory_space<vmem>>, vector<1x8x1xf32>
    %65 = vector.shape_cast %64 : vector<1x8x1xf32> to vector<8x1xf32>
    %66 = vector.shape_cast %63 : vector<8x1xf32> to vector<1x8x1xf32>
    tpu.vector_store %arg10[%c1_37, %c0_38, %c0_39], %66 {strides = array<i32>} : memref<4x8x1xf32, #tpu.memory_space<vmem>>, vector<1x8x1xf32>,
    %c1_40 = arith.constant 1 : index
    %c0_41 = arith.constant 0 : index
    %c0_42 = arith.constant 0 : index
    %67 = vector.load %arg11[%c1_40, %c0_41, %c0_42] : memref<4x8x16xf32, #tpu.memory_space<vmem>>, vector<1x8x16xf32>
    %68 = vector.shape_cast %67 : vector<1x8x16xf32> to vector<8x16xf32>
    %69 = vector.broadcast %54 : vector<8x1xf32> to vector<8x16xf32>
    %70 = arith.mulf %69, %68 : vector<8x16xf32>
    %71 = arith.truncf %57 : vector<8x16xf32> to vector<8x16xbf16>
    %72 = vector.extract_strided_slice %7 {offsets = [0, 80], sizes = [16, 16], strides = [1, 1]} : vector<16x128xbf16> to vector<16x16xbf16>
    %cst_43 = arith.constant dense<0.000000e+00> : vector<8x16xf32>
    %73 = tpu.matmul %71, %72, %cst_43 {dimension_numbers = #tpu.dot_dimension_numbers<[1], [0], [0], [1], [0, 0, 1, 1], [], []>} : vector<8x16xbf16>, vector<16x16xbf16>, vector<8x16xf32> -> vector<8x16xf32>
    %74 = arith.addf %70, %73 : vector<8x16xf32>
    %c1_44 = arith.constant 1 : index
    %c0_45 = arith.constant 0 : index
    %c0_46 = arith.constant 0 : index
    %75 = vector.load %arg11[%c1_44, %c0_45, %c0_46] : memref<4x8x16xf32, #tpu.memory_space<vmem>>, vector<1x8x16xf32>
    %76 = vector.shape_cast %75 : vector<1x8x16xf32> to vector<8x16xf32>
    %77 = vector.shape_cast %74 : vector<8x16xf32> to vector<1x8x16xf32>
    tpu.vector_store %arg11[%c1_44, %c0_45, %c0_46], %77 {strides = array<i32>} : memref<4x8x16xf32, #tpu.memory_space<vmem>>, vector<1x8x16xf32>,
    %c1_47 = arith.constant 1 : index
    %c0_48 = arith.constant 0 : index
    %c0_49 = arith.constant 0 : index
    %78 = vector.load %arg9[%c1_47, %c0_48, %c0_49] : memref<4x8x1xf32, #tpu.memory_space<vmem>>, vector<1x8x1xf32>
    %79 = vector.shape_cast %78 : vector<1x8x1xf32> to vector<8x1xf32>
    %80 = vector.shape_cast %52 : vector<8x1xf32> to vector<1x8x1xf32>
    tpu.vector_store %arg9[%c1_47, %c0_48, %c0_49], %80 {strides = array<i32>} : memref<4x8x1xf32, #tpu.memory_space<vmem>>, vector<1x8x1xf32>,
    %81 = vector.extract_strided_slice %8 {offsets = [0, 32], sizes = [8, 16], strides = [1, 1]} : vector<8x64xbf16> to vector<8x16xbf16>
    %82 = vector.extract_strided_slice %7 {offsets = [0, 32], sizes = [16, 16], strides = [1, 1]} : vector<16x128xbf16> to vector<16x16xbf16>
    %cst_50 = arith.constant dense<0.000000e+00> : vector<8x16xf32>
    %83 = tpu.matmul %81, %82, %cst_50 {dimension_numbers = #tpu.dot_dimension_numbers<[1], [1], [0], [0], [0, 0, 1, 0], [], []>} : vector<8x16xbf16>, vector<16x16xbf16>, vector<8x16xf32> -> vector<8x16xf32>
    %c2 = arith.constant 2 : index
    %c0_51 = arith.constant 0 : index
    %c0_52 = arith.constant 0 : index
    %84 = vector.load %arg9[%c2, %c0_51, %c0_52] : memref<4x8x1xf32, #tpu.memory_space<vmem>>, vector<1x8x1xf32>
    %85 = vector.shape_cast %84 : vector<1x8x1xf32> to vector<8x1xf32>
    %cst_53 = arith.constant dense<0xFF800000> : vector<8xf32>
    %86 = vector.multi_reduction <maximumf>, %83, %cst_53 [1] : vector<8x16xf32> to vector<8xf32>
    %87 = vector.shape_cast %86 : vector<8xf32> to vector<8x1xf32>
    %88 = arith.maximumf %85, %87 : vector<8x1xf32>
    %89 = arith.subf %85, %88 : vector<8x1xf32>
    %90 = math.exp %89 : vector<8x1xf32>
    %91 = vector.broadcast %88 : vector<8x1xf32> to vector<8x16xf32>
    %92 = arith.subf %83, %91 : vector<8x16xf32>
    %93 = math.exp %92 : vector<8x16xf32>
    %c2_54 = arith.constant 2 : index
    %c0_55 = arith.constant 0 : index
    %c0_56 = arith.constant 0 : index
    %94 = vector.load %arg10[%c2_54, %c0_55, %c0_56] : memref<4x8x1xf32, #tpu.memory_space<vmem>>, vector<1x8x1xf32>
    %95 = vector.shape_cast %94 : vector<1x8x1xf32> to vector<8x1xf32>
    %96 = arith.mulf %90, %95 : vector<8x1xf32>
    %cst_57 = arith.constant dense<0.000000e+00> : vector<8xf32>
    %97 = vector.multi_reduction <add>, %93, %cst_57 [1] : vector<8x16xf32> to vector<8xf32>
    %98 = vector.shape_cast %97 : vector<8xf32> to vector<8x1xf32>
    %99 = arith.addf %96, %98 : vector<8x1xf32>
    %c2_58 = arith.constant 2 : index
    %c0_59 = arith.constant 0 : index
    %c0_60 = arith.constant 0 : index
    %100 = vector.load %arg10[%c2_58, %c0_59, %c0_60] : memref<4x8x1xf32, #tpu.memory_space<vmem>>, vector<1x8x1xf32>
    %101 = vector.shape_cast %100 : vector<1x8x1xf32> to vector<8x1xf32>
    %102 = vector.shape_cast %99 : vector<8x1xf32> to vector<1x8x1xf32>
    tpu.vector_store %arg10[%c2_58, %c0_59, %c0_60], %102 {strides = array<i32>} : memref<4x8x1xf32, #tpu.memory_space<vmem>>, vector<1x8x1xf32>,
    %c2_61 = arith.constant 2 : index
    %c0_62 = arith.constant 0 : index
    %c0_63 = arith.constant 0 : index
    %103 = vector.load %arg11[%c2_61, %c0_62, %c0_63] : memref<4x8x16xf32, #tpu.memory_space<vmem>>, vector<1x8x16xf32>
    %104 = vector.shape_cast %103 : vector<1x8x16xf32> to vector<8x16xf32>
    %105 = vector.broadcast %90 : vector<8x1xf32> to vector<8x16xf32>
    %106 = arith.mulf %105, %104 : vector<8x16xf32>
    %107 = arith.truncf %93 : vector<8x16xf32> to vector<8x16xbf16>
    %108 = vector.extract_strided_slice %7 {offsets = [0, 96], sizes = [16, 16], strides = [1, 1]} : vector<16x128xbf16> to vector<16x16xbf16>
    %cst_64 = arith.constant dense<0.000000e+00> : vector<8x16xf32>
    %109 = tpu.matmul %107, %108, %cst_64 {dimension_numbers = #tpu.dot_dimension_numbers<[1], [0], [0], [1], [0, 0, 1, 1], [], []>} : vector<8x16xbf16>, vector<16x16xbf16>, vector<8x16xf32> -> vector<8x16xf32>
    %110 = arith.addf %106, %109 : vector<8x16xf32>
    %c2_65 = arith.constant 2 : index
    %c0_66 = arith.constant 0 : index
    %c0_67 = arith.constant 0 : index
    %111 = vector.load %arg11[%c2_65, %c0_66, %c0_67] : memref<4x8x16xf32, #tpu.memory_space<vmem>>, vector<1x8x16xf32>
    %112 = vector.shape_cast %111 : vector<1x8x16xf32> to vector<8x16xf32>
    %113 = vector.shape_cast %110 : vector<8x16xf32> to vector<1x8x16xf32>
    tpu.vector_store %arg11[%c2_65, %c0_66, %c0_67], %113 {strides = array<i32>} : memref<4x8x16xf32, #tpu.memory_space<vmem>>, vector<1x8x16xf32>,
    %c2_68 = arith.constant 2 : index
    %c0_69 = arith.constant 0 : index
    %c0_70 = arith.constant 0 : index
    %114 = vector.load %arg9[%c2_68, %c0_69, %c0_70] : memref<4x8x1xf32, #tpu.memory_space<vmem>>, vector<1x8x1xf32>
    %115 = vector.shape_cast %114 : vector<1x8x1xf32> to vector<8x1xf32>
    %116 = vector.shape_cast %88 : vector<8x1xf32> to vector<1x8x1xf32>
    tpu.vector_store %arg9[%c2_68, %c0_69, %c0_70], %116 {strides = array<i32>} : memref<4x8x1xf32, #tpu.memory_space<vmem>>, vector<1x8x1xf32>,
    %117 = vector.extract_strided_slice %8 {offsets = [0, 48], sizes = [8, 16], strides = [1, 1]} : vector<8x64xbf16> to vector<8x16xbf16>
    %118 = vector.extract_strided_slice %7 {offsets = [0, 48], sizes = [16, 16], strides = [1, 1]} : vector<16x128xbf16> to vector<16x16xbf16>
    %cst_71 = arith.constant dense<0.000000e+00> : vector<8x16xf32>
    %119 = tpu.matmul %117, %118, %cst_71 {dimension_numbers = #tpu.dot_dimension_numbers<[1], [1], [0], [0], [0, 0, 1, 0], [], []>} : vector<8x16xbf16>, vector<16x16xbf16>, vector<8x16xf32> -> vector<8x16xf32>
    %c3 = arith.constant 3 : index
    %c0_72 = arith.constant 0 : index
    %c0_73 = arith.constant 0 : index
    %120 = vector.load %arg9[%c3, %c0_72, %c0_73] : memref<4x8x1xf32, #tpu.memory_space<vmem>>, vector<1x8x1xf32>
    %121 = vector.shape_cast %120 : vector<1x8x1xf32> to vector<8x1xf32>
    %cst_74 = arith.constant dense<0xFF800000> : vector<8xf32>
    %122 = vector.multi_reduction <maximumf>, %119, %cst_74 [1] : vector<8x16xf32> to vector<8xf32>
    %123 = vector.shape_cast %122 : vector<8xf32> to vector<8x1xf32>
    %124 = arith.maximumf %121, %123 : vector<8x1xf32>
    %125 = arith.subf %121, %124 : vector<8x1xf32>
    %126 = math.exp %125 : vector<8x1xf32>
    %127 = vector.broadcast %124 : vector<8x1xf32> to vector<8x16xf32>
    %128 = arith.subf %119, %127 : vector<8x16xf32>
    %129 = math.exp %128 : vector<8x16xf32>
    %c3_75 = arith.constant 3 : index
    %c0_76 = arith.constant 0 : index
    %c0_77 = arith.constant 0 : index
    %130 = vector.load %arg10[%c3_75, %c0_76, %c0_77] : memref<4x8x1xf32, #tpu.memory_space<vmem>>, vector<1x8x1xf32>
    %131 = vector.shape_cast %130 : vector<1x8x1xf32> to vector<8x1xf32>
    %132 = arith.mulf %126, %131 : vector<8x1xf32>
    %cst_78 = arith.constant dense<0.000000e+00> : vector<8xf32>
    %133 = vector.multi_reduction <add>, %129, %cst_78 [1] : vector<8x16xf32> to vector<8xf32>
    %134 = vector.shape_cast %133 : vector<8xf32> to vector<8x1xf32>
    %135 = arith.addf %132, %134 : vector<8x1xf32>
    %c3_79 = arith.constant 3 : index
    %c0_80 = arith.constant 0 : index
    %c0_81 = arith.constant 0 : index
    %136 = vector.load %arg10[%c3_79, %c0_80, %c0_81] : memref<4x8x1xf32, #tpu.memory_space<vmem>>, vector<1x8x1xf32>
    %137 = vector.shape_cast %136 : vector<1x8x1xf32> to vector<8x1xf32>
    %138 = vector.shape_cast %135 : vector<8x1xf32> to vector<1x8x1xf32>
    tpu.vector_store %arg10[%c3_79, %c0_80, %c0_81], %138 {strides = array<i32>} : memref<4x8x1xf32, #tpu.memory_space<vmem>>, vector<1x8x1xf32>,
    %c3_82 = arith.constant 3 : index
    %c0_83 = arith.constant 0 : index
    %c0_84 = arith.constant 0 : index
    %139 = vector.load %arg11[%c3_82, %c0_83, %c0_84] : memref<4x8x16xf32, #tpu.memory_space<vmem>>, vector<1x8x16xf32>
    %140 = vector.shape_cast %139 : vector<1x8x16xf32> to vector<8x16xf32>
    %141 = vector.broadcast %126 : vector<8x1xf32> to vector<8x16xf32>
    %142 = arith.mulf %141, %140 : vector<8x16xf32>
    %143 = arith.truncf %129 : vector<8x16xf32> to vector<8x16xbf16>
    %144 = vector.extract_strided_slice %7 {offsets = [0, 112], sizes = [16, 16], strides = [1, 1]} : vector<16x128xbf16> to vector<16x16xbf16>
    %cst_85 = arith.constant dense<0.000000e+00> : vector<8x16xf32>
    %145 = tpu.matmul %143, %144, %cst_85 {dimension_numbers = #tpu.dot_dimension_numbers<[1], [0], [0], [1], [0, 0, 1, 1], [], []>} : vector<8x16xbf16>, vector<16x16xbf16>, vector<8x16xf32> -> vector<8x16xf32>
    %146 = arith.addf %142, %145 : vector<8x16xf32>
    %c3_86 = arith.constant 3 : index
    %c0_87 = arith.constant 0 : index
    %c0_88 = arith.constant 0 : index
    %147 = vector.load %arg11[%c3_86, %c0_87, %c0_88] : memref<4x8x16xf32, #tpu.memory_space<vmem>>, vector<1x8x16xf32>
    %148 = vector.shape_cast %147 : vector<1x8x16xf32> to vector<8x16xf32>
    %149 = vector.shape_cast %146 : vector<8x16xf32> to vector<1x8x16xf32>
    tpu.vector_store %arg11[%c3_86, %c0_87, %c0_88], %149 {strides = array<i32>} : memref<4x8x16xf32, #tpu.memory_space<vmem>>, vector<1x8x16xf32>,
    %c3_89 = arith.constant 3 : index
    %c0_90 = arith.constant 0 : index
    %c0_91 = arith.constant 0 : index
    %150 = vector.load %arg9[%c3_89, %c0_90, %c0_91] : memref<4x8x1xf32, #tpu.memory_space<vmem>>, vector<1x8x1xf32>
    %151 = vector.shape_cast %150 : vector<1x8x1xf32> to vector<8x1xf32>
    %152 = vector.shape_cast %124 : vector<8x1xf32> to vector<1x8x1xf32>
    tpu.vector_store %arg9[%c3_89, %c0_90, %c0_91], %152 {strides = array<i32>} : memref<4x8x1xf32, #tpu.memory_space<vmem>>, vector<1x8x1xf32>,
    %c0_i32_92 = arith.constant 0 : i32
    %153 = arith.cmpi eq, %arg1, %c0_i32_92 : i32
    %154 = arith.extui %153 : i1 to i32
    %c0_i32_93 = arith.constant 0 : i32
    %155 = arith.cmpi ne, %154, %c0_i32_93 : i32
    scf.if %155 {
      %c0_94 = arith.constant 0 : index
      %c0_95 = arith.constant 0 : index
      %c0_96 = arith.constant 0 : index
      %156 = vector.load %arg10[%c0_94, %c0_95, %c0_96] : memref<4x8x1xf32, #tpu.memory_space<vmem>>, vector<1x8x1xf32>
      %157 = vector.shape_cast %156 : vector<1x8x1xf32> to vector<8x1xf32>
      %158 = tpu.reciprocal %157 {approx = true} : vector<8x1xf32> -> vector<8x1xf32>
      %c0_97 = arith.constant 0 : index
      %c0_98 = arith.constant 0 : index
      %c0_99 = arith.constant 0 : index
      %159 = vector.load %arg11[%c0_97, %c0_98, %c0_99] : memref<4x8x16xf32, #tpu.memory_space<vmem>>, vector<1x8x16xf32>
      %160 = vector.shape_cast %159 : vector<1x8x16xf32> to vector<8x16xf32>
      %161 = vector.broadcast %158 : vector<8x1xf32> to vector<8x16xf32>
      %162 = arith.mulf %160, %161 : vector<8x16xf32>
      %163 = arith.truncf %162 : vector<8x16xf32> to vector<8x16xbf16>
      %c1_100 = arith.constant 1 : index
      %c0_101 = arith.constant 0 : index
      %c0_102 = arith.constant 0 : index
      %164 = vector.load %arg10[%c1_100, %c0_101, %c0_102] : memref<4x8x1xf32, #tpu.memory_space<vmem>>, vector<1x8x1xf32>
      %165 = vector.shape_cast %164 : vector<1x8x1xf32> to vector<8x1xf32>
      %166 = tpu.reciprocal %165 {approx = true} : vector<8x1xf32> -> vector<8x1xf32>
      %c1_103 = arith.constant 1 : index
      %c0_104 = arith.constant 0 : index
      %c0_105 = arith.constant 0 : index
      %167 = vector.load %arg11[%c1_103, %c0_104, %c0_105] : memref<4x8x16xf32, #tpu.memory_space<vmem>>, vector<1x8x16xf32>
      %168 = vector.shape_cast %167 : vector<1x8x16xf32> to vector<8x16xf32>
      %169 = vector.broadcast %166 : vector<8x1xf32> to vector<8x16xf32>
      %170 = arith.mulf %168, %169 : vector<8x16xf32>
      %171 = arith.truncf %170 : vector<8x16xf32> to vector<8x16xbf16>
      %c2_106 = arith.constant 2 : index
      %c0_107 = arith.constant 0 : index
      %c0_108 = arith.constant 0 : index
      %172 = vector.load %arg10[%c2_106, %c0_107, %c0_108] : memref<4x8x1xf32, #tpu.memory_space<vmem>>, vector<1x8x1xf32>
      %173 = vector.shape_cast %172 : vector<1x8x1xf32> to vector<8x1xf32>
      %174 = tpu.reciprocal %173 {approx = true} : vector<8x1xf32> -> vector<8x1xf32>
      %c2_109 = arith.constant 2 : index
      %c0_110 = arith.constant 0 : index
      %c0_111 = arith.constant 0 : index
      %175 = vector.load %arg11[%c2_109, %c0_110, %c0_111] : memref<4x8x16xf32, #tpu.memory_space<vmem>>, vector<1x8x16xf32>
      %176 = vector.shape_cast %175 : vector<1x8x16xf32> to vector<8x16xf32>
      %177 = vector.broadcast %174 : vector<8x1xf32> to vector<8x16xf32>
      %178 = arith.mulf %176, %177 : vector<8x16xf32>
      %179 = arith.truncf %178 : vector<8x16xf32> to vector<8x16xbf16>
      %c3_112 = arith.constant 3 : index
      %c0_113 = arith.constant 0 : index
      %c0_114 = arith.constant 0 : index
      %180 = vector.load %arg10[%c3_112, %c0_113, %c0_114] : memref<4x8x1xf32, #tpu.memory_space<vmem>>, vector<1x8x1xf32>
      %181 = vector.shape_cast %180 : vector<1x8x1xf32> to vector<8x1xf32>
      %182 = tpu.reciprocal %181 {approx = true} : vector<8x1xf32> -> vector<8x1xf32>
      %c3_115 = arith.constant 3 : index
      %c0_116 = arith.constant 0 : index
      %c0_117 = arith.constant 0 : index
      %183 = vector.load %arg11[%c3_115, %c0_116, %c0_117] : memref<4x8x16xf32, #tpu.memory_space<vmem>>, vector<1x8x16xf32>
      %184 = vector.shape_cast %183 : vector<1x8x16xf32> to vector<8x16xf32>
      %185 = vector.broadcast %182 : vector<8x1xf32> to vector<8x16xf32>
      %186 = arith.mulf %184, %185 : vector<8x16xf32>
      %187 = arith.truncf %186 : vector<8x16xf32> to vector<8x16xbf16>
      %188 = tpu.concatenate %163, %171, %179, %187 in 1 : vector<8x16xbf16>, vector<8x16xbf16>, vector<8x16xbf16>, vector<8x16xbf16> -> vector<8x64xbf16>
      %c0_118 = arith.constant 0 : index
      %c0_119 = arith.constant 0 : index
      %189 = vector.load %arg6[%c0_118, %c0_119] : memref<64x32xbf16, #tpu.memory_space<vmem>>, vector<64x32xbf16>
      %cst_120 = arith.constant dense<0.000000e+00> : vector<8x32xf32>
      %190 = tpu.matmul %188, %189, %cst_120 {dimension_numbers = #tpu.dot_dimension_numbers<[1], [0], [0], [1], [0, 0, 1, 1], [], []>} : vector<8x64xbf16>, vector<64x32xbf16>, vector<8x32xf32> -> vector<8x32xf32>
      %191 = arith.truncf %190 : vector<8x32xf32> to vector<8x32xbf16>
      %c0_121 = arith.constant 0 : index
      %c0_122 = arith.constant 0 : index
      %c0_123 = arith.constant 0 : index
      %192 = vector.load %arg7[%c0_121, %c0_122, %c0_123] : memref<1x8x32xbf16, #tpu.memory_space<vmem>>, vector<1x8x32xbf16>
      %193 = vector.shape_cast %192 : vector<1x8x32xbf16> to vector<8x32xbf16>
      %194 = vector.shape_cast %191 : vector<8x32xbf16> to vector<1x8x32xbf16>
      tpu.vector_store %arg7[%c0_121, %c0_122, %c0_123], %194 {strides = array<i32>} : memref<1x8x32xbf16, #tpu.memory_space<vmem>>, vector<1x8x32xbf16>,
    } else {
    }
    return
  }
  func.func @transform_0(%arg0: i32, %arg1: i32) -> (i32, i32, i32) {
    %c0_i32 = arith.constant 0 : i32
    %c0_i32_0 = arith.constant 0 : i32
    return %arg0, %arg1, %c0_i32 : i32, i32, i32
  }
  func.func @transform_1(%arg0: i32, %arg1: i32) -> (i32, i32, i32) {
    %c0_i32 = arith.constant 0 : i32
    %c0_i32_0 = arith.constant 0 : i32
    %c0_i32_1 = arith.constant 0 : i32
    return %arg0, %c0_i32, %c0_i32_0 : i32, i32, i32
  }
  func.func @transform_2(%arg0: i32, %arg1: i32) -> (i32, i32) {
    %c0_i32 = arith.constant 0 : i32
    %c0_i32_0 = arith.constant 0 : i32
    %c0_i32_1 = arith.constant 0 : i32
    return %c0_i32, %c0_i32_0 : i32, i32
  }
  func.func @transform_3(%arg0: i32, %arg1: i32) -> (i32, i32) {
    %c0_i32 = arith.constant 0 : i32
    %c0_i32_0 = arith.constant 0 : i32
    %c0_i32_1 = arith.constant 0 : i32
    return %c0_i32, %c0_i32_0 : i32, i32
  }
  func.func @transform_4(%arg0: i32, %arg1: i32) -> (i32, i32) {
    %c0_i32 = arith.constant 0 : i32
    %c0_i32_0 = arith.constant 0 : i32
    %c0_i32_1 = arith.constant 0 : i32
    return %c0_i32, %c0_i32_0 : i32, i32
  }
  func.func @transform_5(%arg0: i32, %arg1: i32) -> (i32, i32, i32) {
    %c0_i32 = arith.constant 0 : i32
    %c0_i32_0 = arith.constant 0 : i32
    %c0_i32_1 = arith.constant 0 : i32
    return %arg0, %c0_i32, %c0_i32_0 : i32, i32, i32
  }
}

</mosaic_0001>

<llo_original>
// kernel: tpu_custom_call.1
$region0: #{tpu_custom_call.1}
  #allocation0 [shape = 'u32[]', space=smem, size = 0x4, offset = 0x4, fixed_abs, tag = 'smem constant byte address 0x4 - core index']
  #allocation1 [shape = 'u32[144,128]{1,0:T(1,128)}', space=vmem, size = 0x12000, scoped, tag = 'internal scratch']
  #allocation2 [shape = 'bf16[8,64]{1,0:T(8,128)(2,1)}', space=vmem, size = 0x800, scoped, tag = 'scratch operand']
  #allocation3 [shape = 'f32[4,8,1]{2,1,0:T(8,128)}', space=vmem, size = 0x4000, scoped, tag = 'scratch operand']
  #allocation4 [shape = 'f32[4,8,1]{2,1,0:T(8,128)}', space=vmem, size = 0x4000, scoped, tag = 'scratch operand']
  #allocation5 [shape = 'f32[4,8,16]{2,1,0:T(8,128)}', space=vmem, size = 0x4000, scoped, tag = 'scratch operand']
  %s0 = inlined_call_operand.vmem [shape: bf16[2,16,32], index: 0, kind: input, shape index: {}]
  %s1 = inlined_call_operand.hbm [shape: bf16[2,8,32], index: 1, kind: input, shape index: {}]
  %s2 = inlined_call_operand.vmem [shape: bf16[32,64], index: 2, kind: input, shape index: {}]
  %s3 = inlined_call_operand.vmem [shape: bf16[32,128], index: 3, kind: input, shape index: {}]
  %s4 = inlined_call_operand.vmem [shape: bf16[64,32], index: 4, kind: input, shape index: {}]
  %s5 = inlined_call_operand.hbm [shape: bf16[2,8,32], index: 5, kind: output, shape index: {}]
  %s6 = sld [smem:[#allocation0]]
  $region65: #{tpu_custom_call.1} parent=0
    _
  %s8 = ssub.s32 1, %s6
  %s9 = scalar_select 0, %s8, %s6
  $region1: #{tpu_custom_call.1} parent=0
    #allocation6 [shape = 'u8[4096]{0}', space=vmem, size = 0x1000, scoped, tag = 'input window, operand 1']
    #allocation7 [shape = 's32[2]{0}', space=sflag, size = 0x8, scoped, tag = 'scoped memory for tpu_custom_call.1']
    #allocation8 [shape = 's32[2]{0}', space=sflag, size = 0x8, scoped, tag = 'scoped memory for tpu_custom_call.1']
    #allocation9 [shape = 'u8[4096]{0}', space=vmem, size = 0x1000, scoped, tag = 'output window, operand 0']
    %10 = vsyncpa [#allocation7], 0
    %s11 = scalar_lea.sflag [#allocation7], 1
    %12 = vsyncpa %s11, 0
    %13 = vsyncpa [#allocation8], 0
    %s14 = scalar_lea.sflag [#allocation8], 1
    %15 = vsyncpa %s14, 0
    loop: start=0, step=1, limit=4
    $region2: #{tpu_custom_call.1} parent=1 // loop_pre_header
      _
    $region3: #{tpu_custom_call.1} parent=1 // loop_header
      %s17 = sphi 0, %s21
      %p18 = scmp.ge.s32.totalorder %s17, 4
      %s24 = sphi 0, %s36
      %s25 = sphi 0, %s32
      %s26 = sphi 0, %s24
      %s27 = sphi 0, %s25
      %s28 = sphi 0, %s26
      %s29 = sphi 0, %s27
      %s41 = sphi 0, %s43
      %s44 = sphi 0, %s41
      %s45 = sphi 0, %s44
      %s61 = sphi 0, %s45
      %s67 = sphi 0, %s69
      %s70 = sphi 0, %s67
      %s71 = sphi 0, %s70
      %s87 = sphi 0, %s71
      %s91 = sphi 0, %s91
      %s93 = sphi 0, %s91
      %s94 = sphi 0, %s93
      %s108 = sphi 0, %s94
      %s112 = sphi 0, %s112
      %s114 = sphi 0, %s112
      %s115 = sphi 0, %s114
      %s129 = sphi 0, %s115
      %s133 = sphi 0, %s133
      %s135 = sphi 0, %s133
      %s136 = sphi 0, %s135
      %s150 = sphi 0, %s136
      %s156 = sphi 0, %s158
      %s159 = sphi 0, %s156
      %s160 = sphi 0, %s159
      %s176 = sphi 0, %s160
    $region4: #{tpu_custom_call.1} parent=1 // loop_header_branch
      %20 = sbr.rel (%p18) target = $region8
    $region5: #{tpu_custom_call.1} parent=1 // loop_body
      %s22 = ssub.s32 %s17, 1
      %s23 = ssub.s32 %s17, 2
      %s30 = sadd.s32 1, %s25
      %p31 = scmp.ge.s32.totalorder %s30, 1
      %s32 = scalar_select %p31, 0, %s30
      %s33 = sadd.s32 1, %s24
      %s34 = scalar_select %p31, %s33, %s24
      %p35 = scmp.ge.s32.totalorder %s34, 2
      %s36 = scalar_select %p35, 0, %s34
      %s37 = ssub.s32 %s24, %s36
      %s38 = ssub.s32 %s25, %s32
      %s39 = sor.u32 %s37, %s38
      %p40 = scmp.eq.s32.totalorder %s39, 0
      %s42 = sadd.s32 %s41, 1
      %s43 = scalar_select %p40, %s41, %s42
      %p46 = pneg %p40
      %p47 = scmp.eq.s32.totalorder %s17, 1
      %p48 = por %p46, %p47
      %p49 = scmp.ne.s32.totalorder %s41, %s44
      %p50 = scmp.eq.s32.totalorder %s17, 0
      %p51 = por %p49, %p50
      %p52 = scmp.ne.s32.totalorder %s41, %s44
      %p53 = scmp.eq.s32.totalorder %s22, 1
      %p54 = por %p52, %p53
      %p55 = scmp.ne.s32.totalorder %s44, %s45
      %p56 = scmp.eq.s32.totalorder %s22, 0
      %p57 = por %p55, %p56
      %p58 = scmp.ne.s32.totalorder %s44, %s45
      %p59 = scmp.eq.s32.totalorder %s23, 1
      %p60 = por %p58, %p59
      %p62 = scmp.ne.s32.totalorder %s45, %s61
      %p63 = scmp.eq.s32.totalorder %s23, 0
      %p64 = por %p62, %p63
      %s65 = ssub.s32 %s24, %s36
      %p66 = scmp.eq.s32.totalorder %s65, 0
      %s68 = sadd.s32 %s67, 1
      %s69 = scalar_select %p66, %s67, %s68
      %p72 = pneg %p66
      %p73 = scmp.eq.s32.totalorder %s17, 1
      %p74 = por %p72, %p73
      %p75 = scmp.ne.s32.totalorder %s67, %s70
      %p76 = scmp.eq.s32.totalorder %s17, 0
      %p77 = por %p75, %p76
      %p78 = scmp.ne.s32.totalorder %s67, %s70
      %p79 = scmp.eq.s32.totalorder %s22, 1
      %p80 = por %p78, %p79
      %p81 = scmp.ne.s32.totalorder %s70, %s71
      %p82 = scmp.eq.s32.totalorder %s22, 0
      %p83 = por %p81, %p82
      %p84 = scmp.ne.s32.totalorder %s70, %s71
      %p85 = scmp.eq.s32.totalorder %s23, 1
      %p86 = por %p84, %p85
      %p88 = scmp.ne.s32.totalorder %s71, %s87
      %p89 = scmp.eq.s32.totalorder %s23, 0
      %p90 = por %p88, %p89
      %s92 = sadd.s32 %s91, 1
      %p95 = scmp.eq.s32.totalorder %s17, 1
      %p96 = scmp.ne.s32.totalorder %s91, %s93
      %p97 = scmp.eq.s32.totalorder %s17, 0
      %p98 = por %p96, %p97
      %p99 = scmp.ne.s32.totalorder %s91, %s93
      %p100 = scmp.eq.s32.totalorder %s22, 1
      %p101 = por %p99, %p100
      %p102 = scmp.ne.s32.totalorder %s93, %s94
      %p103 = scmp.eq.s32.totalorder %s22, 0
      %p104 = por %p102, %p103
      %p105 = scmp.ne.s32.totalorder %s93, %s94
      %p106 = scmp.eq.s32.totalorder %s23, 1
      %p107 = por %p105, %p106
      %p109 = scmp.ne.s32.totalorder %s94, %s108
      %p110 = scmp.eq.s32.totalorder %s23, 0
      %p111 = por %p109, %p110
      %s113 = sadd.s32 %s112, 1
      %p116 = scmp.eq.s32.totalorder %s17, 1
      %p117 = scmp.ne.s32.totalorder %s112, %s114
      %p118 = scmp.eq.s32.totalorder %s17, 0
      %p119 = por %p117, %p118
      %p120 = scmp.ne.s32.totalorder %s112, %s114
      %p121 = scmp.eq.s32.totalorder %s22, 1
      %p122 = por %p120, %p121
      %p123 = scmp.ne.s32.totalorder %s114, %s115
      %p124 = scmp.eq.s32.totalorder %s22, 0
      %p125 = por %p123, %p124
      %p126 = scmp.ne.s32.totalorder %s114, %s115
      %p127 = scmp.eq.s32.totalorder %s23, 1
      %p128 = por %p126, %p127
      %p130 = scmp.ne.s32.totalorder %s115, %s129
      %p131 = scmp.eq.s32.totalorder %s23, 0
      %p132 = por %p130, %p131
      %s134 = sadd.s32 %s133, 1
      %p137 = scmp.eq.s32.totalorder %s17, 1
      %p138 = scmp.ne.s32.totalorder %s133, %s135
      %p139 = scmp.eq.s32.totalorder %s17, 0
      %p140 = por %p138, %p139
      %p141 = scmp.ne.s32.totalorder %s133, %s135
      %p142 = scmp.eq.s32.totalorder %s22, 1
      %p143 = por %p141, %p142
      %p144 = scmp.ne.s32.totalorder %s135, %s136
      %p145 = scmp.eq.s32.totalorder %s22, 0
      %p146 = por %p144, %p145
      %p147 = scmp.ne.s32.totalorder %s135, %s136
      %p148 = scmp.eq.s32.totalorder %s23, 1
      %p149 = por %p147, %p148
      %p151 = scmp.ne.s32.totalorder %s136, %s150
      %p152 = scmp.eq.s32.totalorder %s23, 0
      %p153 = por %p151, %p152
      %s154 = ssub.s32 %s24, %s36
      %p155 = scmp.eq.s32.totalorder %s154, 0
      %s157 = sadd.s32 %s156, 1
      %s158 = scalar_select %p155, %s156, %s157
      %p161 = pneg %p155
      %p162 = scmp.eq.s32.totalorder %s17, 1
      %p163 = por %p161, %p162
      %p164 = scmp.ne.s32.totalorder %s156, %s159
      %p165 = scmp.eq.s32.totalorder %s17, 0
      %p166 = por %p164, %p165
      %p167 = scmp.ne.s32.totalorder %s156, %s159
      %p168 = scmp.eq.s32.totalorder %s22, 1
      %p169 = por %p167, %p168
      %p170 = scmp.ne.s32.totalorder %s159, %s160
      %p171 = scmp.eq.s32.totalorder %s22, 0
      %p172 = por %p170, %p171
      %p173 = scmp.ne.s32.totalorder %s159, %s160
      %p174 = scmp.eq.s32.totalorder %s23, 1
      %p175 = por %p173, %p174
      %p177 = scmp.ne.s32.totalorder %s160, %s176
      %p178 = scmp.eq.s32.totalorder %s23, 0
      %p179 = por %p177, %p178
      %p180 = scmp.le.s32.totalorder 1, %s17
      %p181 = scmp.lt.s32.totalorder %s17, 3
      %p182 = pnand %p180, %p181
      %p183 = pneg %p182
      // Predicated region
      $region9: #{tpu_custom_call.1} parent=5 // pred_check
        _
      $region10: #{tpu_custom_call.1} parent=5 // pred_check_branch
        %185 = sbr.rel (%p182) target = $region12
      $region11: #{tpu_custom_call.1} parent=5 // pred_region
        %s186 = ssub.s32 %s17, 1
        // Predicated region
        $region13: #{tpu_custom_call.1} parent=11 // pred_check
          %p187 = pneg %p104
        $region14: #{tpu_custom_call.1} parent=11 // pred_check_branch
          %189 = sbr.rel (%p187) target = $region16
        $region15: #{tpu_custom_call.1} parent=11 // pred_region
          _
        $region16: #{tpu_custom_call.1} parent=11 // pred_fallthru
          _
        // Predicated region
        $region17: #{tpu_custom_call.1} parent=11 // pred_check
          %p190 = pneg %p125
        $region18: #{tpu_custom_call.1} parent=11 // pred_check_branch
          %192 = sbr.rel (%p190) target = $region20
        $region19: #{tpu_custom_call.1} parent=11 // pred_region
          _
        $region20: #{tpu_custom_call.1} parent=11 // pred_fallthru
          _
        // Predicated region
        $region21: #{tpu_custom_call.1} parent=11 // pred_check
          %p193 = pneg %p146
        $region22: #{tpu_custom_call.1} parent=11 // pred_check_branch
          %195 = sbr.rel (%p193) target = $region24
        $region23: #{tpu_custom_call.1} parent=11 // pred_region
          _
        $region24: #{tpu_custom_call.1} parent=11 // pred_fallthru
          _
      $region12: #{tpu_custom_call.1} parent=5 // pred_fallthru
        _
      %p196 = scmp.lt.s32.totalorder %s17, 2
      // Predicated region
      $region25: #{tpu_custom_call.1} parent=5 // pred_check
        %p197 = pneg %p196
      $region26: #{tpu_custom_call.1} parent=5 // pred_check_branch
        %199 = sbr.rel (%p197) target = $region28
      $region27: #{tpu_custom_call.1} parent=5 // pred_region
        // Predicated region
        $region29: #{tpu_custom_call.1} parent=27 // pred_check
          %p200 = pneg %p51
        $region30: #{tpu_custom_call.1} parent=27 // pred_check_branch
          %202 = sbr.rel (%p200) target = $region32
        $region31: #{tpu_custom_call.1} parent=27 // pred_region
          %s203 = smul.u32 2, %s25
          %p204 = scmp.lt.s32.totalorder %s24, 1
          %s205 = scalar_select %p204, %s24, 1
          %p206 = scmp.lt.s32.totalorder %s203, 1
          %s207 = scalar_select %p206, %s203, 1
          %s208 = smul.addr %s205, 2
          %s209 = sadd.s32 %s207, %s208
          %s210 = smul.addr %s209, 4
          %s211 = scalar_lea.vmem %s0, %s210
          %s212 = smul.u32 2, %s25
        $region32: #{tpu_custom_call.1} parent=27 // pred_fallthru
          _
        // Predicated region
        $region33: #{tpu_custom_call.1} parent=27 // pred_check
          %p213 = pneg %p77
        $region34: #{tpu_custom_call.1} parent=27 // pred_check_branch
          %215 = sbr.rel (%p213) target = $region36
        $region35: #{tpu_custom_call.1} parent=27 // pred_region
          %s216 = sand.u32 %s67, 1
          %s217 = scalar_lea.sflag [#allocation7], %s216
          %s218 = sand.u32 %s67, 1
          %s219 = smul.addr %s218, 4
          %s220 = scalar_lea.vmem [#allocation6], %s219
          %s222 = ssub.s32 64, 64
          %223 = vsyncadd %s217, %s222
          %s224 = smul.addr %s24, 64
          %s225 = scalar_lea.hbm %s1, %s224
          %s227 = sshll.u32 %s220, 4
          %s228 = int_to_ptr.vmem [resolvable:$true] %s227
          %230 = dma.hbm_to_vmem [thread:$0]  %s225, 64, %s228, %s217
        $region36: #{tpu_custom_call.1} parent=27 // pred_fallthru
          _
      $region28: #{tpu_custom_call.1} parent=5 // pred_fallthru
        _
      %p231 = scmp.le.s32.totalorder 1, %s17
      %p232 = scmp.lt.s32.totalorder %s17, 3
      %p233 = pnand %p231, %p232
      %p234 = pneg %p233
      // Predicated region
      $region37: #{tpu_custom_call.1} parent=5 // pred_check
        _
      $region38: #{tpu_custom_call.1} parent=5 // pred_check_branch
        %236 = sbr.rel (%p233) target = $region40
      $region39: #{tpu_custom_call.1} parent=5 // pred_region
        %s237 = ssub.s32 %s17, 1
        %s238 = sand.u32 %s70, 1
        %s239 = scalar_lea.sflag [#allocation7], %s238
        %s240 = sand.u32 %s70, 1
        %s241 = smul.addr %s240, 4
        %s242 = scalar_lea.vmem [#allocation6], %s241
        // Predicated region
        $region41: #{tpu_custom_call.1} parent=39 // pred_check
          %p243 = pneg %p83
        $region42: #{tpu_custom_call.1} parent=39 // pred_check_branch
          %245 = sbr.rel (%p243) target = $region44
        $region43: #{tpu_custom_call.1} parent=39 // pred_region
          %246 = dma.done %s239, 64
        $region44: #{tpu_custom_call.1} parent=39 // pred_fallthru
          _
        %s247 = smul.u32 2, %s27
        %p248 = scmp.lt.s32.totalorder %s26, 1
        %s249 = scalar_select %p248, %s26, 1
        %p250 = scmp.lt.s32.totalorder %s247, 1
        %s251 = scalar_select %p250, %s247, 1
        %s252 = smul.addr %s249, 2
        %s253 = sadd.s32 %s251, %s252
        %s254 = smul.addr %s253, 4
        %s255 = scalar_lea.vmem %s0, %s254
        %p256 = pneg %p57
        %p257 = pneg %p54
        %s258 = sand.u32 %s70, 1
        %s259 = scalar_lea.sflag [#allocation7], %s258
        %s260 = sand.u32 %s70, 1
        %s261 = smul.addr %s260, 4
        %s262 = scalar_lea.vmem [#allocation6], %s261
        %p263 = pneg %p83
        %p264 = pneg %p80
        %p265 = pneg %p104
        %p266 = pneg %p101
        %p267 = pneg %p125
        %p268 = pneg %p122
        %p269 = pneg %p146
        %p270 = pneg %p143
        %p271 = pneg %p172
        %p272 = pneg %p169
        %s273 = sand.u32 %s159, 1
        %s274 = scalar_lea.sflag [#allocation8], %s273
        %s275 = sand.u32 %s159, 1
        %s276 = smul.addr %s275, 4
        %s277 = scalar_lea.vmem [#allocation9], %s276
        %s278 = smul.u32 2, %s27
        %p279 = scmp.lt.s32.totalorder %s26, 1
        %s280 = scalar_select %p279, %s26, 1
        %p281 = scmp.lt.s32.totalorder %s278, 1
        %s282 = scalar_select %p281, %s278, 1
        %s283 = smul.addr %s280, 2
        %s284 = sadd.s32 %s282, %s283
        %s285 = smul.addr %s284, 4
        %s286 = scalar_lea.vmem %s0, %s285
        %s287 = smul.u32 2, %s27
        %v289 = vld [vmem:[%s3] sm:$0xf]
        %v290 = vld [vmem:[%s3 + $0x4] sm:$0xf]
        %v291 = vld [vmem:[%s3 + $0x8] sm:$0xf]
        %v292 = vld [vmem:[%s3 + $0xc] sm:$0xf]
        %p293 = scmp.eq.s32.totalorder %s27, 0
        // Predicated region
        $region45: #{tpu_custom_call.1} parent=39 // pred_check
          %p294 = pneg %p293
        $region46: #{tpu_custom_call.1} parent=39 // pred_check_branch
          %296 = sbr.rel (%p294) target = $region48
        $region47: #{tpu_custom_call.1} parent=39 // pred_region
          %v297 = vld [vmem:[%s242] sm:$0xf]
          %v298 = vld [vmem:[%s2] sm:$0xf]
          %v299 = vld [vmem:[%s2 + $0x4] sm:$0xf]
          %v300 = vld [vmem:[%s2 + $0x8] sm:$0xf]
          %v301 = vld [vmem:[%s2 + $0xc] sm:$0xf]
          %v306 = vunpack.c.l.b16 %v298
          %v307 = vunpack.c.l.b16 %v299
          %v308 = vunpack.c.l.b16 %v300
          %v309 = vunpack.c.l.b16 %v301
          %v310 = vpack.c.b16 %v307, %v306
          %v311 = vpack.c.b16 %v309, %v308
          %vm314 = vcmask 261120
          %v316 = vsel %vm314, %v297, 0
          %318 = vmatprep.subr.bf16.mxu0 0
          %319 = vmatpush1.bf16.msra.mxu0 %v310
          %320 = vmatprep.subr.bf16.mxu0 0
          %321 = vmatpush1.bf16.msra.mxu0 %v311
          %322 = vmatprep.subr.bf16.mxu0 0
          %323 = vmatpush1.bf16.msra.mxu0 0
          %324 = vmatprep.subr.bf16.mxu0 0
          %325 = vmatpush1.bf16.msra.mxu0 0
          %326 = vmatprep.subr.bf16.mxu0 0
          %327 = vmatpush1.bf16.msra.mxu0 0
          %328 = vmatprep.subr.bf16.mxu0 0
          %329 = vmatpush1.bf16.msra.mxu0 0
          %330 = vmatprep.subr.bf16.mxu0 0
          %331 = vmatpush1.bf16.msra.mxu0 0
          %332 = vmatprep.subr.bf16.mxu0 0
          %333 = vmatpush1.bf16.msra.mxu0 0
          %334 = vmatprep.subr.bf16.mxu0 0
          %335 = vmatpush1.bf16.msra.mxu0 0
          %336 = vmatprep.subr.bf16.mxu0 0
          %337 = vmatpush1.bf16.msra.mxu0 0
          %338 = vmatprep.subr.bf16.mxu0 0
          %339 = vmatpush1.bf16.msra.mxu0 0
          %340 = vmatprep.subr.bf16.mxu0 0
          %341 = vmatpush1.bf16.msra.mxu0 0
          %342 = vmatprep.subr.bf16.mxu0 0
          %343 = vmatpush1.bf16.msra.mxu0 0
          %344 = vmatprep.subr.bf16.mxu0 0
          %345 = vmatpush1.bf16.msra.mxu0 0
          %346 = vmatprep.subr.bf16.mxu0 0
          %347 = vmatpush1.bf16.msra.mxu0 0
          %348 = vmatprep.subr.bf16.mxu0 0
          %349 = vmatpush1.bf16.msra.mxu0 0
          %350 = vmatprep.mubr.bf16.mxu0 0
          %351 = vmatmul.mubr.bf16.gmra.mrb[0].mxu0 %v316
          %v352 = vpop.f32.mrb[0].mxu0
          %v353 = vadd.f32 0.0, %v352
          %v354 = vpop.f32.mrb[0].mxu0
          %v355 = vpop.f32.mrb[0].mxu0
          %v356 = vpop.f32.mrb[0].mxu0
          %357 = vdwg.mxu0
          %v358 = vpack.c.bf16 %v353, %v353
          %vm359 = vcmask 519168
          %360 = vst.msk [vmem:[#allocation2] sm:$0xf] %vm359, %v358
          %v365 = vunpack.c.l.b16 %v289
          %v366 = vunpack.c.l.b16 %v290
          %v367 = vunpack.c.l.b16 %v291
          %v368 = vunpack.c.l.b16 %v292
          %v369 = vpack.c.b16 %v366, %v365
          %v370 = vpack.c.b16 %v368, %v367
          %373 = vmatprep.subr.bf16.mxu0 0
          %374 = vmatpush1.bf16.msra.mxu0 %v369
          %375 = vmatprep.subr.bf16.mxu0 0
          %376 = vmatpush1.bf16.msra.mxu0 %v370
          %377 = vmatprep.subr.bf16.mxu0 0
          %378 = vmatpush1.bf16.msra.mxu0 0
          %379 = vmatprep.subr.bf16.mxu0 0
          %380 = vmatpush1.bf16.msra.mxu0 0
          %381 = vmatprep.subr.bf16.mxu0 0
          %382 = vmatpush1.bf16.msra.mxu0 0
          %383 = vmatprep.subr.bf16.mxu0 0
          %384 = vmatpush1.bf16.msra.mxu0 0
          %385 = vmatprep.subr.bf16.mxu0 0
          %386 = vmatpush1.bf16.msra.mxu0 0
          %387 = vmatprep.subr.bf16.mxu0 0
          %388 = vmatpush1.bf16.msra.mxu0 0
          %389 = vmatprep.subr.bf16.mxu0 0
          %390 = vmatpush1.bf16.msra.mxu0 0
          %391 = vmatprep.subr.bf16.mxu0 0
          %392 = vmatpush1.bf16.msra.mxu0 0
          %393 = vmatprep.subr.bf16.mxu0 0
          %394 = vmatpush1.bf16.msra.mxu0 0
          %395 = vmatprep.subr.bf16.mxu0 0
          %396 = vmatpush1.bf16.msra.mxu0 0
          %397 = vmatprep.subr.bf16.mxu0 0
          %398 = vmatpush1.bf16.msra.mxu0 0
          %399 = vmatprep.subr.bf16.mxu0 0
          %400 = vmatpush1.bf16.msra.mxu0 0
          %401 = vmatprep.subr.bf16.mxu0 0
          %402 = vmatpush1.bf16.msra.mxu0 0
          %403 = vmatprep.subr.bf16.mxu0 0
          %404 = vmatpush1.bf16.msra.mxu0 0
          %405 = vmatprep.mubr.bf16.mxu0 0
          %406 = vmatmul.mubr.bf16.gmra.mrb[0].mxu0 %v316
          %v407 = vpop.f32.mrb[0].mxu0
          %v408 = vadd.f32 0.0, %v407
          %v409 = vpop.f32.mrb[0].mxu0
          %v410 = vpop.f32.mrb[0].mxu0
          %v411 = vpop.f32.mrb[0].mxu0
          %412 = vdwg.mxu0
          %v413 = vpack.c.bf16 %v408, %v408
          %vm414 = vcmask 130048
          %v416 = vsel %vm414, %v358, 0
          %v419 = vsel %vm414, %v413, 0
          %421 = vmatprep.subr.bf16.mxu0 0
          %422 = vmatpush1.bf16.xpose.msra.mxu0 %v419
          %423 = vmatprep.subr.bf16.mxu0 0
          %424 = vmatpush1.bf16.xpose.msra.mxu0 0
          %425 = vmatprep.subr.bf16.mxu0 0
          %426 = vmatpush1.bf16.xpose.msra.mxu0 0
          %427 = vmatprep.subr.bf16.mxu0 0
          %428 = vmatpush1.bf16.xpose.msra.mxu0 0
          %429 = vmatprep.subr.bf16.mxu0 0
          %430 = vmatpush1.bf16.xpose.msra.mxu0 0
          %431 = vmatprep.subr.bf16.mxu0 0
          %432 = vmatpush1.bf16.xpose.msra.mxu0 0
          %433 = vmatprep.subr.bf16.mxu0 0
          %434 = vmatpush1.bf16.xpose.msra.mxu0 0
          %435 = vmatprep.subr.bf16.mxu0 0
          %436 = vmatpush1.bf16.xpose.msra.mxu0 0
          %437 = vmatprep.subr.bf16.mxu0 0
          %438 = vmatpush1.bf16.xpose.msra.mxu0 0
          %439 = vmatprep.subr.bf16.mxu0 0
          %440 = vmatpush1.bf16.xpose.msra.mxu0 0
          %441 = vmatprep.subr.bf16.mxu0 0
          %442 = vmatpush1.bf16.xpose.msra.mxu0 0
          %443 = vmatprep.subr.bf16.mxu0 0
          %444 = vmatpush1.bf16.xpose.msra.mxu0 0
          %445 = vmatprep.subr.bf16.mxu0 0
          %446 = vmatpush1.bf16.xpose.msra.mxu0 0
          %447 = vmatprep.subr.bf16.mxu0 0
          %448 = vmatpush1.bf16.xpose.msra.mxu0 0
          %449 = vmatprep.subr.bf16.mxu0 0
          %450 = vmatpush1.bf16.xpose.msra.mxu0 0
          %451 = vmatprep.subr.bf16.mxu0 0
          %452 = vmatpush1.bf16.xpose.msra.mxu0 0
          %453 = vmatprep.mubr.bf16.mxu0 0
          %454 = vmatmul.mubr.bf16.gmra.mrb[0].mxu0 %v416
          %v455 = vpop.f32.mrb[0].mxu0
          %v456 = vadd.f32 0.0, %v455
          %v457 = vpop.f32.mrb[0].mxu0
          %v458 = vpop.f32.mrb[0].mxu0
          %v459 = vpop.f32.mrb[0].mxu0
          %460 = vdwg.mxu0
          %vm461 = vcmask 64512
          %v462 = vsel %vm461, %v456, -inf
          %463 = vmax.xlane.f32.xlu0 %v462
          %v464 = vpop.xlane.xlu0 %463
          %v465 = vsub.f32 %v456, %v464
          %v466 = vmul.f32 %v465, 1.442695
          %v467 = vpow.pop %v466
          %vm468 = vcmask 7168
          %469 = vst.msk [vmem:[#allocation3] sm:$0xff] %vm468, %v464
          %v470 = vsel %vm461, %v467, 0.0
          %471 = vadd.xlane.f32.xlu0 %v470
          %v472 = vpop.xlane.xlu0 %471
          %473 = vst.msk [vmem:[#allocation4] sm:$0xff] %vm468, %v472
          %v474 = vpack.c.bf16 %v467, %v467
          %476 = vrot.lane.b32.xlu0 %v413, 64
          %v477 = vpop.permute.xlu0 %476
          %v479 = vsel %vm461, %v474, 0
          %vm481 = vcmask 1043456
          %v483 = vsel %vm481, %v477, 0
          %485 = vmatprep.subr.bf16.mxu0 0
          %486 = vmatpush1.bf16.msra.mxu0 %v483
          %487 = vmatprep.subr.bf16.mxu0 0
          %488 = vmatpush1.bf16.msra.mxu0 0
          %489 = vmatprep.subr.bf16.mxu0 0
          %490 = vmatpush1.bf16.msra.mxu0 0
          %491 = vmatprep.subr.bf16.mxu0 0
          %492 = vmatpush1.bf16.msra.mxu0 0
          %493 = vmatprep.subr.bf16.mxu0 0
          %494 = vmatpush1.bf16.msra.mxu0 0
          %495 = vmatprep.subr.bf16.mxu0 0
          %496 = vmatpush1.bf16.msra.mxu0 0
          %497 = vmatprep.subr.bf16.mxu0 0
          %498 = vmatpush1.bf16.msra.mxu0 0
          %499 = vmatprep.subr.bf16.mxu0 0
          %500 = vmatpush1.bf16.msra.mxu0 0
          %501 = vmatprep.subr.bf16.mxu0 0
          %502 = vmatpush1.bf16.msra.mxu0 0
          %503 = vmatprep.subr.bf16.mxu0 0
          %504 = vmatpush1.bf16.msra.mxu0 0
          %505 = vmatprep.subr.bf16.mxu0 0
          %506 = vmatpush1.bf16.msra.mxu0 0
          %507 = vmatprep.subr.bf16.mxu0 0
          %508 = vmatpush1.bf16.msra.mxu0 0
          %509 = vmatprep.subr.bf16.mxu0 0
          %510 = vmatpush1.bf16.msra.mxu0 0
          %511 = vmatprep.subr.bf16.mxu0 0
          %512 = vmatpush1.bf16.msra.mxu0 0
          %513 = vmatprep.subr.bf16.mxu0 0
          %514 = vmatpush1.bf16.msra.mxu0 0
          %515 = vmatprep.subr.bf16.mxu0 0
          %516 = vmatpush1.bf16.msra.mxu0 0
          %517 = vmatprep.mubr.bf16.mxu0 0
          %518 = vmatmul.mubr.bf16.gmra.mrb[0].mxu0 %v479
          %v519 = vpop.f32.mrb[0].mxu0
          %v520 = vadd.f32 0.0, %v519
          %v521 = vpop.f32.mrb[0].mxu0
          %v522 = vpop.f32.mrb[0].mxu0
          %v523 = vpop.f32.mrb[0].mxu0
          %524 = vdwg.mxu0
          %525 = vst.msk [vmem:[#allocation5] sm:$0xff] %vm414, %v520
          %527 = vrot.lane.b32.xlu0 %v358, 112
          %v528 = vpop.permute.xlu0 %527
          %529 = vrot.lane.b32.xlu0 %v413, 112
          %v530 = vpop.permute.xlu0 %529
          %v532 = vsel %vm414, %v528, 0
          %v535 = vsel %vm414, %v530, 0
          %537 = vmatprep.subr.bf16.mxu0 0
          %538 = vmatpush1.bf16.xpose.msra.mxu0 %v535
          %539 = vmatprep.subr.bf16.mxu0 0
          %540 = vmatpush1.bf16.xpose.msra.mxu0 0
          %541 = vmatprep.subr.bf16.mxu0 0
          %542 = vmatpush1.bf16.xpose.msra.mxu0 0
          %543 = vmatprep.subr.bf16.mxu0 0
          %544 = vmatpush1.bf16.xpose.msra.mxu0 0
          %545 = vmatprep.subr.bf16.mxu0 0
          %546 = vmatpush1.bf16.xpose.msra.mxu0 0
          %547 = vmatprep.subr.bf16.mxu0 0
          %548 = vmatpush1.bf16.xpose.msra.mxu0 0
          %549 = vmatprep.subr.bf16.mxu0 0
          %550 = vmatpush1.bf16.xpose.msra.mxu0 0
          %551 = vmatprep.subr.bf16.mxu0 0
          %552 = vmatpush1.bf16.xpose.msra.mxu0 0
          %553 = vmatprep.subr.bf16.mxu0 0
          %554 = vmatpush1.bf16.xpose.msra.mxu0 0
          %555 = vmatprep.subr.bf16.mxu0 0
          %556 = vmatpush1.bf16.xpose.msra.mxu0 0
          %557 = vmatprep.subr.bf16.mxu0 0
          %558 = vmatpush1.bf16.xpose.msra.mxu0 0
          %559 = vmatprep.subr.bf16.mxu0 0
          %560 = vmatpush1.bf16.xpose.msra.mxu0 0
          %561 = vmatprep.subr.bf16.mxu0 0
          %562 = vmatpush1.bf16.xpose.msra.mxu0 0
          %563 = vmatprep.subr.bf16.mxu0 0
          %564 = vmatpush1.bf16.xpose.msra.mxu0 0
          %565 = vmatprep.subr.bf16.mxu0 0
          %566 = vmatpush1.bf16.xpose.msra.mxu0 0
          %567 = vmatprep.subr.bf16.mxu0 0
          %568 = vmatpush1.bf16.xpose.msra.mxu0 0
          %569 = vmatprep.mubr.bf16.mxu0 0
          %570 = vmatmul.mubr.bf16.gmra.mrb[0].mxu0 %v532
          %v571 = vpop.f32.mrb[0].mxu0
          %v572 = vadd.f32 0.0, %v571
          %v573 = vpop.f32.mrb[0].mxu0
          %v574 = vpop.f32.mrb[0].mxu0
          %v575 = vpop.f32.mrb[0].mxu0
          %576 = vdwg.mxu0
          %v577 = vsel %vm461, %v572, -inf
          %578 = vmax.xlane.f32.xlu0 %v577
          %v579 = vpop.xlane.xlu0 %578
          %v580 = vsub.f32 %v572, %v579
          %v581 = vmul.f32 %v580, 1.442695
          %v582 = vpow.pop %v581
          %s583 = scalar_lea.vmem [#allocation3], 8
          %584 = vst.msk [vmem:[%s583] sm:$0xff] %vm468, %v579
          %v585 = vsel %vm461, %v582, 0.0
          %586 = vadd.xlane.f32.xlu0 %v585
          %v587 = vpop.xlane.xlu0 %586
          %s588 = scalar_lea.vmem [#allocation4], 8
          %589 = vst.msk [vmem:[%s588] sm:$0xff] %vm468, %v587
          %v590 = vpack.c.bf16 %v582, %v582
          %591 = vrot.lane.b32.xlu0 %v413, 48
          %v592 = vpop.permute.xlu0 %591
          %v594 = vsel %vm461, %v590, 0
          %v597 = vsel %vm481, %v592, 0
          %599 = vmatprep.subr.bf16.mxu0 0
          %600 = vmatpush1.bf16.msra.mxu0 %v597
          %601 = vmatprep.subr.bf16.mxu0 0
          %602 = vmatpush1.bf16.msra.mxu0 0
          %603 = vmatprep.subr.bf16.mxu0 0
          %604 = vmatpush1.bf16.msra.mxu0 0
          %605 = vmatprep.subr.bf16.mxu0 0
          %606 = vmatpush1.bf16.msra.mxu0 0
          %607 = vmatprep.subr.bf16.mxu0 0
          %608 = vmatpush1.bf16.msra.mxu0 0
          %609 = vmatprep.subr.bf16.mxu0 0
          %610 = vmatpush1.bf16.msra.mxu0 0
          %611 = vmatprep.subr.bf16.mxu0 0
          %612 = vmatpush1.bf16.msra.mxu0 0
          %613 = vmatprep.subr.bf16.mxu0 0
          %614 = vmatpush1.bf16.msra.mxu0 0
          %615 = vmatprep.subr.bf16.mxu0 0
          %616 = vmatpush1.bf16.msra.mxu0 0
          %617 = vmatprep.subr.bf16.mxu0 0
          %618 = vmatpush1.bf16.msra.mxu0 0
          %619 = vmatprep.subr.bf16.mxu0 0
          %620 = vmatpush1.bf16.msra.mxu0 0
          %621 = vmatprep.subr.bf16.mxu0 0
          %622 = vmatpush1.bf16.msra.mxu0 0
          %623 = vmatprep.subr.bf16.mxu0 0
          %624 = vmatpush1.bf16.msra.mxu0 0
          %625 = vmatprep.subr.bf16.mxu0 0
          %626 = vmatpush1.bf16.msra.mxu0 0
          %627 = vmatprep.subr.bf16.mxu0 0
          %628 = vmatpush1.bf16.msra.mxu0 0
          %629 = vmatprep.subr.bf16.mxu0 0
          %630 = vmatpush1.bf16.msra.mxu0 0
          %631 = vmatprep.mubr.bf16.mxu0 0
          %632 = vmatmul.mubr.bf16.gmra.mrb[0].mxu0 %v594
          %v633 = vpop.f32.mrb[0].mxu0
          %v634 = vadd.f32 0.0, %v633
          %v635 = vpop.f32.mrb[0].mxu0
          %v636 = vpop.f32.mrb[0].mxu0
          %v637 = vpop.f32.mrb[0].mxu0
          %638 = vdwg.mxu0
          %s639 = scalar_lea.vmem [#allocation5], 8
          %640 = vst.msk [vmem:[%s639] sm:$0xff] %vm414, %v634
          %641 = vrot.lane.b32.xlu0 %v358, 96
          %v642 = vpop.permute.xlu0 %641
          %643 = vrot.lane.b32.xlu0 %v413, 96
          %v644 = vpop.permute.xlu0 %643
          %v646 = vsel %vm414, %v642, 0
          %v649 = vsel %vm414, %v644, 0
          %651 = vmatprep.subr.bf16.mxu0 0
          %652 = vmatpush1.bf16.xpose.msra.mxu0 %v649
          %653 = vmatprep.subr.bf16.mxu0 0
          %654 = vmatpush1.bf16.xpose.msra.mxu0 0
          %655 = vmatprep.subr.bf16.mxu0 0
          %656 = vmatpush1.bf16.xpose.msra.mxu0 0
          %657 = vmatprep.subr.bf16.mxu0 0
          %658 = vmatpush1.bf16.xpose.msra.mxu0 0
          %659 = vmatprep.subr.bf16.mxu0 0
          %660 = vmatpush1.bf16.xpose.msra.mxu0 0
          %661 = vmatprep.subr.bf16.mxu0 0
          %662 = vmatpush1.bf16.xpose.msra.mxu0 0
          %663 = vmatprep.subr.bf16.mxu0 0
          %664 = vmatpush1.bf16.xpose.msra.mxu0 0
          %665 = vmatprep.subr.bf16.mxu0 0
          %666 = vmatpush1.bf16.xpose.msra.mxu0 0
          %667 = vmatprep.subr.bf16.mxu0 0
          %668 = vmatpush1.bf16.xpose.msra.mxu0 0
          %669 = vmatprep.subr.bf16.mxu0 0
          %670 = vmatpush1.bf16.xpose.msra.mxu0 0
          %671 = vmatprep.subr.bf16.mxu0 0
          %672 = vmatpush1.bf16.xpose.msra.mxu0 0
          %673 = vmatprep.subr.bf16.mxu0 0
          %674 = vmatpush1.bf16.xpose.msra.mxu0 0
          %675 = vmatprep.subr.bf16.mxu0 0
          %676 = vmatpush1.bf16.xpose.msra.mxu0 0
          %677 = vmatprep.subr.bf16.mxu0 0
          %678 = vmatpush1.bf16.xpose.msra.mxu0 0
          %679 = vmatprep.subr.bf16.mxu0 0
          %680 = vmatpush1.bf16.xpose.msra.mxu0 0
          %681 = vmatprep.subr.bf16.mxu0 0
          %682 = vmatpush1.bf16.xpose.msra.mxu0 0
          %683 = vmatprep.mubr.bf16.mxu0 0
          %684 = vmatmul.mubr.bf16.gmra.mrb[0].mxu0 %v646
          %v685 = vpop.f32.mrb[0].mxu0
          %v686 = vadd.f32 0.0, %v685
          %v687 = vpop.f32.mrb[0].mxu0
          %v688 = vpop.f32.mrb[0].mxu0
          %v689 = vpop.f32.mrb[0].mxu0
          %690 = vdwg.mxu0
          %v691 = vsel %vm461, %v686, -inf
          %692 = vmax.xlane.f32.xlu0 %v691
          %v693 = vpop.xlane.xlu0 %692
          %v694 = vsub.f32 %v686, %v693
          %v695 = vmul.f32 %v694, 1.442695
          %v696 = vpow.pop %v695
          %s697 = scalar_lea.vmem [#allocation3], 16
          %698 = vst.msk [vmem:[%s697] sm:$0xff] %vm468, %v693
          %v699 = vsel %vm461, %v696, 0.0
          %700 = vadd.xlane.f32.xlu0 %v699
          %v701 = vpop.xlane.xlu0 %700
          %s702 = scalar_lea.vmem [#allocation4], 16
          %703 = vst.msk [vmem:[%s702] sm:$0xff] %vm468, %v701
          %v704 = vpack.c.bf16 %v696, %v696
          %705 = vrot.lane.b32.xlu0 %v413, 32
          %v706 = vpop.permute.xlu0 %705
          %v708 = vsel %vm461, %v704, 0
          %v711 = vsel %vm481, %v706, 0
          %713 = vmatprep.subr.bf16.mxu0 0
          %714 = vmatpush1.bf16.msra.mxu0 %v711
          %715 = vmatprep.subr.bf16.mxu0 0
          %716 = vmatpush1.bf16.msra.mxu0 0
          %717 = vmatprep.subr.bf16.mxu0 0
          %718 = vmatpush1.bf16.msra.mxu0 0
          %719 = vmatprep.subr.bf16.mxu0 0
          %720 = vmatpush1.bf16.msra.mxu0 0
          %721 = vmatprep.subr.bf16.mxu0 0
          %722 = vmatpush1.bf16.msra.mxu0 0
          %723 = vmatprep.subr.bf16.mxu0 0
          %724 = vmatpush1.bf16.msra.mxu0 0
          %725 = vmatprep.subr.bf16.mxu0 0
          %726 = vmatpush1.bf16.msra.mxu0 0
          %727 = vmatprep.subr.bf16.mxu0 0
          %728 = vmatpush1.bf16.msra.mxu0 0
          %729 = vmatprep.subr.bf16.mxu0 0
          %730 = vmatpush1.bf16.msra.mxu0 0
          %731 = vmatprep.subr.bf16.mxu0 0
          %732 = vmatpush1.bf16.msra.mxu0 0
          %733 = vmatprep.subr.bf16.mxu0 0
          %734 = vmatpush1.bf16.msra.mxu0 0
          %735 = vmatprep.subr.bf16.mxu0 0
          %736 = vmatpush1.bf16.msra.mxu0 0
          %737 = vmatprep.subr.bf16.mxu0 0
          %738 = vmatpush1.bf16.msra.mxu0 0
          %739 = vmatprep.subr.bf16.mxu0 0
          %740 = vmatpush1.bf16.msra.mxu0 0
          %741 = vmatprep.subr.bf16.mxu0 0
          %742 = vmatpush1.bf16.msra.mxu0 0
          %743 = vmatprep.subr.bf16.mxu0 0
          %744 = vmatpush1.bf16.msra.mxu0 0
          %745 = vmatprep.mubr.bf16.mxu0 0
          %746 = vmatmul.mubr.bf16.gmra.mrb[0].mxu0 %v708
          %v747 = vpop.f32.mrb[0].mxu0
          %v748 = vadd.f32 0.0, %v747
          %v749 = vpop.f32.mrb[0].mxu0
          %v750 = vpop.f32.mrb[0].mxu0
          %v751 = vpop.f32.mrb[0].mxu0
          %752 = vdwg.mxu0
          %s753 = scalar_lea.vmem [#allocation5], 16
          %754 = vst.msk [vmem:[%s753] sm:$0xff] %vm414, %v748
          %755 = vrot.lane.b32.xlu0 %v358, 80
          %v756 = vpop.permute.xlu0 %755
          %757 = vrot.lane.b32.xlu0 %v413, 80
          %v758 = vpop.permute.xlu0 %757
          %v760 = vsel %vm414, %v756, 0
          %v763 = vsel %vm414, %v758, 0
          %765 = vmatprep.subr.bf16.mxu0 0
          %766 = vmatpush1.bf16.xpose.msra.mxu0 %v763
          %767 = vmatprep.subr.bf16.mxu0 0
          %768 = vmatpush1.bf16.xpose.msra.mxu0 0
          %769 = vmatprep.subr.bf16.mxu0 0
          %770 = vmatpush1.bf16.xpose.msra.mxu0 0
          %771 = vmatprep.subr.bf16.mxu0 0
          %772 = vmatpush1.bf16.xpose.msra.mxu0 0
          %773 = vmatprep.subr.bf16.mxu0 0
          %774 = vmatpush1.bf16.xpose.msra.mxu0 0
          %775 = vmatprep.subr.bf16.mxu0 0
          %776 = vmatpush1.bf16.xpose.msra.mxu0 0
          %777 = vmatprep.subr.bf16.mxu0 0
          %778 = vmatpush1.bf16.xpose.msra.mxu0 0
          %779 = vmatprep.subr.bf16.mxu0 0
          %780 = vmatpush1.bf16.xpose.msra.mxu0 0
          %781 = vmatprep.subr.bf16.mxu0 0
          %782 = vmatpush1.bf16.xpose.msra.mxu0 0
          %783 = vmatprep.subr.bf16.mxu0 0
          %784 = vmatpush1.bf16.xpose.msra.mxu0 0
          %785 = vmatprep.subr.bf16.mxu0 0
          %786 = vmatpush1.bf16.xpose.msra.mxu0 0
          %787 = vmatprep.subr.bf16.mxu0 0
          %788 = vmatpush1.bf16.xpose.msra.mxu0 0
          %789 = vmatprep.subr.bf16.mxu0 0
          %790 = vmatpush1.bf16.xpose.msra.mxu0 0
          %791 = vmatprep.subr.bf16.mxu0 0
          %792 = vmatpush1.bf16.xpose.msra.mxu0 0
          %793 = vmatprep.subr.bf16.mxu0 0
          %794 = vmatpush1.bf16.xpose.msra.mxu0 0
          %795 = vmatprep.subr.bf16.mxu0 0
          %796 = vmatpush1.bf16.xpose.msra.mxu0 0
          %797 = vmatprep.mubr.bf16.mxu0 0
          %798 = vmatmul.mubr.bf16.gmra.mrb[0].mxu0 %v760
          %v799 = vpop.f32.mrb[0].mxu0
          %v800 = vadd.f32 0.0, %v799
          %v801 = vpop.f32.mrb[0].mxu0
          %v802 = vpop.f32.mrb[0].mxu0
          %v803 = vpop.f32.mrb[0].mxu0
          %804 = vdwg.mxu0
          %v805 = vsel %vm461, %v800, -inf
          %806 = vmax.xlane.f32.xlu0 %v805
          %v807 = vpop.xlane.xlu0 %806
          %v808 = vsub.f32 %v800, %v807
          %v809 = vmul.f32 %v808, 1.442695
          %v810 = vpow.pop %v809
          %s811 = scalar_lea.vmem [#allocation3], 24
          %812 = vst.msk [vmem:[%s811] sm:$0xff] %vm468, %v807
          %v813 = vsel %vm461, %v810, 0.0
          %814 = vadd.xlane.f32.xlu0 %v813
          %v815 = vpop.xlane.xlu0 %814
          %s816 = scalar_lea.vmem [#allocation4], 24
          %817 = vst.msk [vmem:[%s816] sm:$0xff] %vm468, %v815
          %v818 = vpack.c.bf16 %v810, %v810
          %819 = vrot.lane.b32.xlu0 %v413, 16
          %v820 = vpop.permute.xlu0 %819
          %v822 = vsel %vm461, %v818, 0
          %v825 = vsel %vm481, %v820, 0
          %827 = vmatprep.subr.bf16.mxu0 0
          %828 = vmatpush1.bf16.msra.mxu0 %v825
          %829 = vmatprep.subr.bf16.mxu0 0
          %830 = vmatpush1.bf16.msra.mxu0 0
          %831 = vmatprep.subr.bf16.mxu0 0
          %832 = vmatpush1.bf16.msra.mxu0 0
          %833 = vmatprep.subr.bf16.mxu0 0
          %834 = vmatpush1.bf16.msra.mxu0 0
          %835 = vmatprep.subr.bf16.mxu0 0
          %836 = vmatpush1.bf16.msra.mxu0 0
          %837 = vmatprep.subr.bf16.mxu0 0
          %838 = vmatpush1.bf16.msra.mxu0 0
          %839 = vmatprep.subr.bf16.mxu0 0
          %840 = vmatpush1.bf16.msra.mxu0 0
          %841 = vmatprep.subr.bf16.mxu0 0
          %842 = vmatpush1.bf16.msra.mxu0 0
          %843 = vmatprep.subr.bf16.mxu0 0
          %844 = vmatpush1.bf16.msra.mxu0 0
          %845 = vmatprep.subr.bf16.mxu0 0
          %846 = vmatpush1.bf16.msra.mxu0 0
          %847 = vmatprep.subr.bf16.mxu0 0
          %848 = vmatpush1.bf16.msra.mxu0 0
          %849 = vmatprep.subr.bf16.mxu0 0
          %850 = vmatpush1.bf16.msra.mxu0 0
          %851 = vmatprep.subr.bf16.mxu0 0
          %852 = vmatpush1.bf16.msra.mxu0 0
          %853 = vmatprep.subr.bf16.mxu0 0
          %854 = vmatpush1.bf16.msra.mxu0 0
          %855 = vmatprep.subr.bf16.mxu0 0
          %856 = vmatpush1.bf16.msra.mxu0 0
          %857 = vmatprep.subr.bf16.mxu0 0
          %858 = vmatpush1.bf16.msra.mxu0 0
          %859 = vmatprep.mubr.bf16.mxu0 0
          %860 = vmatmul.mubr.bf16.gmra.mrb[0].mxu0 %v822
          %v861 = vpop.f32.mrb[0].mxu0
          %v862 = vadd.f32 0.0, %v861
          %v863 = vpop.f32.mrb[0].mxu0
          %v864 = vpop.f32.mrb[0].mxu0
          %v865 = vpop.f32.mrb[0].mxu0
          %866 = vdwg.mxu0
          %s867 = scalar_lea.vmem [#allocation5], 24
          %868 = vst.msk [vmem:[%s867] sm:$0xff] %vm414, %v862
        $region48: #{tpu_custom_call.1} parent=39 // pred_fallthru
          _
        %v869 = vld [vmem:[%s286] sm:$0xf]
        %v870 = vld [vmem:[%s286 + $0x4] sm:$0xf]
        %v873 = vunpack.c.l.b16 %v869
        %v874 = vunpack.c.l.b16 %v870
        %v875 = vpack.c.b16 %v874, %v873
        %v880 = vunpack.c.l.b16 %v289
        %v881 = vunpack.c.l.b16 %v290
        %v882 = vunpack.c.l.b16 %v291
        %v883 = vunpack.c.l.b16 %v292
        %v884 = vpack.c.b16 %v881, %v880
        %v885 = vpack.c.b16 %v883, %v882
        %vm888 = vcmask 261120
        %v890 = vsel %vm888, %v875, 0
        %892 = vmatprep.subr.bf16.mxu0 0
        %893 = vmatpush1.bf16.msra.mxu0 %v884
        %894 = vmatprep.subr.bf16.mxu0 0
        %895 = vmatpush1.bf16.msra.mxu0 %v885
        %896 = vmatprep.subr.bf16.mxu0 0
        %897 = vmatpush1.bf16.msra.mxu0 0
        %898 = vmatprep.subr.bf16.mxu0 0
        %899 = vmatpush1.bf16.msra.mxu0 0
        %900 = vmatprep.subr.bf16.mxu0 0
        %901 = vmatpush1.bf16.msra.mxu0 0
        %902 = vmatprep.subr.bf16.mxu0 0
        %903 = vmatpush1.bf16.msra.mxu0 0
        %904 = vmatprep.subr.bf16.mxu0 0
        %905 = vmatpush1.bf16.msra.mxu0 0
        %906 = vmatprep.subr.bf16.mxu0 0
        %907 = vmatpush1.bf16.msra.mxu0 0
        %908 = vmatprep.subr.bf16.mxu0 0
        %909 = vmatpush1.bf16.msra.mxu0 0
        %910 = vmatprep.subr.bf16.mxu0 0
        %911 = vmatpush1.bf16.msra.mxu0 0
        %912 = vmatprep.subr.bf16.mxu0 0
        %913 = vmatpush1.bf16.msra.mxu0 0
        %914 = vmatprep.subr.bf16.mxu0 0
        %915 = vmatpush1.bf16.msra.mxu0 0
        %916 = vmatprep.subr.bf16.mxu0 0
        %917 = vmatpush1.bf16.msra.mxu0 0
        %918 = vmatprep.subr.bf16.mxu0 0
        %919 = vmatpush1.bf16.msra.mxu0 0
        %920 = vmatprep.subr.bf16.mxu0 0
        %921 = vmatpush1.bf16.msra.mxu0 0
        %922 = vmatprep.subr.bf16.mxu0 0
        %923 = vmatpush1.bf16.msra.mxu0 0
        %924 = vmatprep.mubr.bf16.mxu0 0
        %925 = vmatmul.mubr.bf16.gmra.mrb[0].mxu0 %v890
        %v926 = vpop.f32.mrb[0].mxu0
        %v927 = vadd.f32 0.0, %v926
        %v928 = vpop.f32.mrb[0].mxu0
        %v929 = vpop.f32.mrb[0].mxu0
        %v930 = vadd.f32 0.0, %v929
        %v931 = vpop.f32.mrb[0].mxu0
        %932 = vdwg.mxu0
        %v933 = vpack.c.bf16 %v930, %v927
        %v934 = vld [vmem:[#allocation2] sm:$0xf]
        %vm935 = vcmask 130048
        %v937 = vsel %vm935, %v934, 0
        %v940 = vsel %vm935, %v933, 0
        %942 = vmatprep.subr.bf16.mxu0 0
        %943 = vmatpush1.bf16.xpose.msra.mxu0 %v940
        %944 = vmatprep.subr.bf16.mxu0 0
        %945 = vmatpush1.bf16.xpose.msra.mxu0 0
        %946 = vmatprep.subr.bf16.mxu0 0
        %947 = vmatpush1.bf16.xpose.msra.mxu0 0
        %948 = vmatprep.subr.bf16.mxu0 0
        %949 = vmatpush1.bf16.xpose.msra.mxu0 0
        %950 = vmatprep.subr.bf16.mxu0 0
        %951 = vmatpush1.bf16.xpose.msra.mxu0 0
        %952 = vmatprep.subr.bf16.mxu0 0
        %953 = vmatpush1.bf16.xpose.msra.mxu0 0
        %954 = vmatprep.subr.bf16.mxu0 0
        %955 = vmatpush1.bf16.xpose.msra.mxu0 0
        %956 = vmatprep.subr.bf16.mxu0 0
        %957 = vmatpush1.bf16.xpose.msra.mxu0 0
        %958 = vmatprep.subr.bf16.mxu0 0
        %959 = vmatpush1.bf16.xpose.msra.mxu0 0
        %960 = vmatprep.subr.bf16.mxu0 0
        %961 = vmatpush1.bf16.xpose.msra.mxu0 0
        %962 = vmatprep.subr.bf16.mxu0 0
        %963 = vmatpush1.bf16.xpose.msra.mxu0 0
        %964 = vmatprep.subr.bf16.mxu0 0
        %965 = vmatpush1.bf16.xpose.msra.mxu0 0
        %966 = vmatprep.subr.bf16.mxu0 0
        %967 = vmatpush1.bf16.xpose.msra.mxu0 0
        %968 = vmatprep.subr.bf16.mxu0 0
        %969 = vmatpush1.bf16.xpose.msra.mxu0 0
        %970 = vmatprep.subr.bf16.mxu0 0
        %971 = vmatpush1.bf16.xpose.msra.mxu0 0
        %972 = vmatprep.subr.bf16.mxu0 0
        %973 = vmatpush1.bf16.xpose.msra.mxu0 0
        %974 = vmatprep.mubr.bf16.mxu0 0
        %975 = vmatmul.mubr.bf16.gmra.mrb[0].mxu0 %v937
        %v976 = vpop.f32.mrb[0].mxu0
        %v977 = vadd.f32 0.0, %v976
        %v978 = vpop.f32.mrb[0].mxu0
        %v979 = vpop.f32.mrb[0].mxu0
        %v980 = vpop.f32.mrb[0].mxu0
        %981 = vdwg.mxu0
        %v982 = vld [vmem:[#allocation3] sm:$0xff]
        %v983 = vsel %vm935, %v977, -inf
        %984 = vmax.xlane.f32.xlu0 %v983
        %v985 = vpop.xlane.xlu0 %984
        %v986 = vmax.f32 %v982, %v985
        %v987 = vsub.f32 %v982, %v986
        %v988 = vmul.f32 %v987, 1.442695
        %v989 = vpow.pop %v988
        %991 = vset.pattern.permute.xlu0 0
        %992 = vperm.xlu0 %991, %v986
        %v993 = vpop.permute.xlu0 %992
        %v995 = vsub.f32 %v977, %v993
        %v996 = vmul.f32 %v995, 1.442695
        %v997 = vpow.pop %v996
        %v998 = vld [vmem:[#allocation4] sm:$0xff]
        %v999 = vmul.f32 %v989, %v998
        %v1000 = vsel %vm935, %v997, 0.0
        %1001 = vadd.xlane.f32.xlu0 %v1000
        %v1002 = vpop.xlane.xlu0 %1001
        %v1003 = vadd.f32 %v999, %v1002
        %vm1004 = vcmask 7168
        %1005 = vst.msk [vmem:[#allocation4] sm:$0xff] %vm1004, %v1003
        %v1006 = vld [vmem:[#allocation5] sm:$0xff]
        %1008 = vset.pattern.permute.xlu0 0
        %1009 = vperm.xlu0 %1008, %v989
        %v1010 = vpop.permute.xlu0 %1009
        %v1012 = vmul.f32 %v1010, %v1006
        %v1013 = vpack.c.bf16 %v997, %v997
        %1015 = vrot.lane.b32.xlu0 %v933, 64
        %v1016 = vpop.permute.xlu0 %1015
        %v1019 = vsel %vm935, %v1013, 0
        %1021 = vmatprep.subr.bf16.mxu0 0
        %1022 = vmatpush1.bf16.msra.mxu0 %v1016
        %1023 = vmatprep.subr.bf16.mxu0 0
        %1024 = vmatpush1.bf16.msra.mxu0 0
        %1025 = vmatprep.subr.bf16.mxu0 0
        %1026 = vmatpush1.bf16.msra.mxu0 0
        %1027 = vmatprep.subr.bf16.mxu0 0
        %1028 = vmatpush1.bf16.msra.mxu0 0
        %1029 = vmatprep.subr.bf16.mxu0 0
        %1030 = vmatpush1.bf16.msra.mxu0 0
        %1031 = vmatprep.subr.bf16.mxu0 0
        %1032 = vmatpush1.bf16.msra.mxu0 0
        %1033 = vmatprep.subr.bf16.mxu0 0
        %1034 = vmatpush1.bf16.msra.mxu0 0
        %1035 = vmatprep.subr.bf16.mxu0 0
        %1036 = vmatpush1.bf16.msra.mxu0 0
        %1037 = vmatprep.subr.bf16.mxu0 0
        %1038 = vmatpush1.bf16.msra.mxu0 0
        %1039 = vmatprep.subr.bf16.mxu0 0
        %1040 = vmatpush1.bf16.msra.mxu0 0
        %1041 = vmatprep.subr.bf16.mxu0 0
        %1042 = vmatpush1.bf16.msra.mxu0 0
        %1043 = vmatprep.subr.bf16.mxu0 0
        %1044 = vmatpush1.bf16.msra.mxu0 0
        %1045 = vmatprep.subr.bf16.mxu0 0
        %1046 = vmatpush1.bf16.msra.mxu0 0
        %1047 = vmatprep.subr.bf16.mxu0 0
        %1048 = vmatpush1.bf16.msra.mxu0 0
        %1049 = vmatprep.subr.bf16.mxu0 0
        %1050 = vmatpush1.bf16.msra.mxu0 0
        %1051 = vmatprep.subr.bf16.mxu0 0
        %1052 = vmatpush1.bf16.msra.mxu0 0
        %1053 = vmatprep.mubr.bf16.mxu0 0
        %1054 = vmatmul.mubr.bf16.gmra.mrb[0].mxu0 %v1019
        %v1055 = vpop.f32.mrb[0].mxu0
        %v1056 = vadd.f32 0.0, %v1055
        %v1057 = vpop.f32.mrb[0].mxu0
        %v1058 = vpop.f32.mrb[0].mxu0
        %v1059 = vpop.f32.mrb[0].mxu0
        %1060 = vdwg.mxu0
        %v1061 = vadd.f32 %v1012, %v1056
        %1062 = vst.msk [vmem:[#allocation5] sm:$0xff] %vm935, %v1061
        %1063 = vst.msk [vmem:[#allocation3] sm:$0xff] %vm1004, %v986
        %v1065 = vunpack.c.l.b16 %v934
        %v1066 = vpack.c.b16 %v1065, %v1065
        %1067 = vrot.lane.b32.xlu0 %v1066, 112
        %v1068 = vpop.permute.xlu0 %1067
        %1069 = vrot.lane.b32.xlu0 %v933, 112
        %v1070 = vpop.permute.xlu0 %1069
        %v1072 = vsel %vm935, %v1068, 0
        %v1075 = vsel %vm935, %v1070, 0
        %1077 = vmatprep.subr.bf16.mxu0 0
        %1078 = vmatpush1.bf16.xpose.msra.mxu0 %v1075
        %1079 = vmatprep.subr.bf16.mxu0 0
        %1080 = vmatpush1.bf16.xpose.msra.mxu0 0
        %1081 = vmatprep.subr.bf16.mxu0 0
        %1082 = vmatpush1.bf16.xpose.msra.mxu0 0
        %1083 = vmatprep.subr.bf16.mxu0 0
        %1084 = vmatpush1.bf16.xpose.msra.mxu0 0
        %1085 = vmatprep.subr.bf16.mxu0 0
        %1086 = vmatpush1.bf16.xpose.msra.mxu0 0
        %1087 = vmatprep.subr.bf16.mxu0 0
        %1088 = vmatpush1.bf16.xpose.msra.mxu0 0
        %1089 = vmatprep.subr.bf16.mxu0 0
        %1090 = vmatpush1.bf16.xpose.msra.mxu0 0
        %1091 = vmatprep.subr.bf16.mxu0 0
        %1092 = vmatpush1.bf16.xpose.msra.mxu0 0
        %1093 = vmatprep.subr.bf16.mxu0 0
        %1094 = vmatpush1.bf16.xpose.msra.mxu0 0
        %1095 = vmatprep.subr.bf16.mxu0 0
        %1096 = vmatpush1.bf16.xpose.msra.mxu0 0
        %1097 = vmatprep.subr.bf16.mxu0 0
        %1098 = vmatpush1.bf16.xpose.msra.mxu0 0
        %1099 = vmatprep.subr.bf16.mxu0 0
        %1100 = vmatpush1.bf16.xpose.msra.mxu0 0
        %1101 = vmatprep.subr.bf16.mxu0 0
        %1102 = vmatpush1.bf16.xpose.msra.mxu0 0
        %1103 = vmatprep.subr.bf16.mxu0 0
        %1104 = vmatpush1.bf16.xpose.msra.mxu0 0
        %1105 = vmatprep.subr.bf16.mxu0 0
        %1106 = vmatpush1.bf16.xpose.msra.mxu0 0
        %1107 = vmatprep.subr.bf16.mxu0 0
        %1108 = vmatpush1.bf16.xpose.msra.mxu0 0
        %1109 = vmatprep.mubr.bf16.mxu0 0
        %1110 = vmatmul.mubr.bf16.gmra.mrb[0].mxu0 %v1072
        %v1111 = vpop.f32.mrb[0].mxu0
        %v1112 = vadd.f32 0.0, %v1111
        %v1113 = vpop.f32.mrb[0].mxu0
        %v1114 = vpop.f32.mrb[0].mxu0
        %v1115 = vpop.f32.mrb[0].mxu0
        %1116 = vdwg.mxu0
        %s1117 = scalar_lea.vmem [#allocation3], 8
        %v1118 = vld [vmem:[%s1117] sm:$0xff]
        %v1119 = vsel %vm935, %v1112, -inf
        %1120 = vmax.xlane.f32.xlu0 %v1119
        %v1121 = vpop.xlane.xlu0 %1120
        %v1122 = vmax.f32 %v1118, %v1121
        %v1123 = vsub.f32 %v1118, %v1122
        %v1124 = vmul.f32 %v1123, 1.442695
        %v1125 = vpow.pop %v1124
        %1127 = vset.pattern.permute.xlu0 0
        %1128 = vperm.xlu0 %1127, %v1122
        %v1129 = vpop.permute.xlu0 %1128
        %v1131 = vsub.f32 %v1112, %v1129
        %v1132 = vmul.f32 %v1131, 1.442695
        %v1133 = vpow.pop %v1132
        %s1134 = scalar_lea.vmem [#allocation4], 8
        %v1135 = vld [vmem:[%s1134] sm:$0xff]
        %v1136 = vmul.f32 %v1125, %v1135
        %v1137 = vsel %vm935, %v1133, 0.0
        %1138 = vadd.xlane.f32.xlu0 %v1137
        %v1139 = vpop.xlane.xlu0 %1138
        %v1140 = vadd.f32 %v1136, %v1139
        %1141 = vst.msk [vmem:[%s1134] sm:$0xff] %vm1004, %v1140
        %s1142 = scalar_lea.vmem [#allocation5], 8
        %v1143 = vld [vmem:[%s1142] sm:$0xff]
        %1145 = vset.pattern.permute.xlu0 0
        %1146 = vperm.xlu0 %1145, %v1125
        %v1147 = vpop.permute.xlu0 %1146
        %v1149 = vmul.f32 %v1147, %v1143
        %v1150 = vpack.c.bf16 %v1133, %v1133
        %1151 = vrot.lane.b32.xlu0 %v933, 48
        %v1152 = vpop.permute.xlu0 %1151
        %v1155 = vsel %vm935, %v1150, 0
        %1157 = vmatprep.subr.bf16.mxu0 0
        %1158 = vmatpush1.bf16.msra.mxu0 %v1152
        %1159 = vmatprep.subr.bf16.mxu0 0
        %1160 = vmatpush1.bf16.msra.mxu0 0
        %1161 = vmatprep.subr.bf16.mxu0 0
        %1162 = vmatpush1.bf16.msra.mxu0 0
        %1163 = vmatprep.subr.bf16.mxu0 0
        %1164 = vmatpush1.bf16.msra.mxu0 0
        %1165 = vmatprep.subr.bf16.mxu0 0
        %1166 = vmatpush1.bf16.msra.mxu0 0
        %1167 = vmatprep.subr.bf16.mxu0 0
        %1168 = vmatpush1.bf16.msra.mxu0 0
        %1169 = vmatprep.subr.bf16.mxu0 0
        %1170 = vmatpush1.bf16.msra.mxu0 0
        %1171 = vmatprep.subr.bf16.mxu0 0
        %1172 = vmatpush1.bf16.msra.mxu0 0
        %1173 = vmatprep.subr.bf16.mxu0 0
        %1174 = vmatpush1.bf16.msra.mxu0 0
        %1175 = vmatprep.subr.bf16.mxu0 0
        %1176 = vmatpush1.bf16.msra.mxu0 0
        %1177 = vmatprep.subr.bf16.mxu0 0
        %1178 = vmatpush1.bf16.msra.mxu0 0
        %1179 = vmatprep.subr.bf16.mxu0 0
        %1180 = vmatpush1.bf16.msra.mxu0 0
        %1181 = vmatprep.subr.bf16.mxu0 0
        %1182 = vmatpush1.bf16.msra.mxu0 0
        %1183 = vmatprep.subr.bf16.mxu0 0
        %1184 = vmatpush1.bf16.msra.mxu0 0
        %1185 = vmatprep.subr.bf16.mxu0 0
        %1186 = vmatpush1.bf16.msra.mxu0 0
        %1187 = vmatprep.subr.bf16.mxu0 0
        %1188 = vmatpush1.bf16.msra.mxu0 0
        %1189 = vmatprep.mubr.bf16.mxu0 0
        %1190 = vmatmul.mubr.bf16.gmra.mrb[0].mxu0 %v1155
        %v1191 = vpop.f32.mrb[0].mxu0
        %v1192 = vadd.f32 0.0, %v1191
        %v1193 = vpop.f32.mrb[0].mxu0
        %v1194 = vpop.f32.mrb[0].mxu0
        %v1195 = vpop.f32.mrb[0].mxu0
        %1196 = vdwg.mxu0
        %v1197 = vadd.f32 %v1149, %v1192
        %1198 = vst.msk [vmem:[%s1142] sm:$0xff] %vm935, %v1197
        %1199 = vst.msk [vmem:[%s1117] sm:$0xff] %vm1004, %v1122
        %1200 = vrot.lane.b32.xlu0 %v1066, 96
        %v1201 = vpop.permute.xlu0 %1200
        %1202 = vrot.lane.b32.xlu0 %v933, 96
        %v1203 = vpop.permute.xlu0 %1202
        %v1205 = vsel %vm935, %v1201, 0
        %v1208 = vsel %vm935, %v1203, 0
        %1210 = vmatprep.subr.bf16.mxu0 0
        %1211 = vmatpush1.bf16.xpose.msra.mxu0 %v1208
        %1212 = vmatprep.subr.bf16.mxu0 0
        %1213 = vmatpush1.bf16.xpose.msra.mxu0 0
        %1214 = vmatprep.subr.bf16.mxu0 0
        %1215 = vmatpush1.bf16.xpose.msra.mxu0 0
        %1216 = vmatprep.subr.bf16.mxu0 0
        %1217 = vmatpush1.bf16.xpose.msra.mxu0 0
        %1218 = vmatprep.subr.bf16.mxu0 0
        %1219 = vmatpush1.bf16.xpose.msra.mxu0 0
        %1220 = vmatprep.subr.bf16.mxu0 0
        %1221 = vmatpush1.bf16.xpose.msra.mxu0 0
        %1222 = vmatprep.subr.bf16.mxu0 0
        %1223 = vmatpush1.bf16.xpose.msra.mxu0 0
        %1224 = vmatprep.subr.bf16.mxu0 0
        %1225 = vmatpush1.bf16.xpose.msra.mxu0 0
        %1226 = vmatprep.subr.bf16.mxu0 0
        %1227 = vmatpush1.bf16.xpose.msra.mxu0 0
        %1228 = vmatprep.subr.bf16.mxu0 0
        %1229 = vmatpush1.bf16.xpose.msra.mxu0 0
        %1230 = vmatprep.subr.bf16.mxu0 0
        %1231 = vmatpush1.bf16.xpose.msra.mxu0 0
        %1232 = vmatprep.subr.bf16.mxu0 0
        %1233 = vmatpush1.bf16.xpose.msra.mxu0 0
        %1234 = vmatprep.subr.bf16.mxu0 0
        %1235 = vmatpush1.bf16.xpose.msra.mxu0 0
        %1236 = vmatprep.subr.bf16.mxu0 0
        %1237 = vmatpush1.bf16.xpose.msra.mxu0 0
        %1238 = vmatprep.subr.bf16.mxu0 0
        %1239 = vmatpush1.bf16.xpose.msra.mxu0 0
        %1240 = vmatprep.subr.bf16.mxu0 0
        %1241 = vmatpush1.bf16.xpose.msra.mxu0 0
        %1242 = vmatprep.mubr.bf16.mxu0 0
        %1243 = vmatmul.mubr.bf16.gmra.mrb[0].mxu0 %v1205
        %v1244 = vpop.f32.mrb[0].mxu0
        %v1245 = vadd.f32 0.0, %v1244
        %v1246 = vpop.f32.mrb[0].mxu0
        %v1247 = vpop.f32.mrb[0].mxu0
        %v1248 = vpop.f32.mrb[0].mxu0
        %1249 = vdwg.mxu0
        %s1250 = scalar_lea.vmem [#allocation3], 16
        %v1251 = vld [vmem:[%s1250] sm:$0xff]
        %v1252 = vsel %vm935, %v1245, -inf
        %1253 = vmax.xlane.f32.xlu0 %v1252
        %v1254 = vpop.xlane.xlu0 %1253
        %v1255 = vmax.f32 %v1251, %v1254
        %v1256 = vsub.f32 %v1251, %v1255
        %v1257 = vmul.f32 %v1256, 1.442695
        %v1258 = vpow.pop %v1257
        %1260 = vset.pattern.permute.xlu0 0
        %1261 = vperm.xlu0 %1260, %v1255
        %v1262 = vpop.permute.xlu0 %1261
        %v1264 = vsub.f32 %v1245, %v1262
        %v1265 = vmul.f32 %v1264, 1.442695
        %v1266 = vpow.pop %v1265
        %s1267 = scalar_lea.vmem [#allocation4], 16
        %v1268 = vld [vmem:[%s1267] sm:$0xff]
        %v1269 = vmul.f32 %v1258, %v1268
        %v1270 = vsel %vm935, %v1266, 0.0
        %1271 = vadd.xlane.f32.xlu0 %v1270
        %v1272 = vpop.xlane.xlu0 %1271
        %v1273 = vadd.f32 %v1269, %v1272
        %1274 = vst.msk [vmem:[%s1267] sm:$0xff] %vm1004, %v1273
        %s1275 = scalar_lea.vmem [#allocation5], 16
        %v1276 = vld [vmem:[%s1275] sm:$0xff]
        %1278 = vset.pattern.permute.xlu0 0
        %1279 = vperm.xlu0 %1278, %v1258
        %v1280 = vpop.permute.xlu0 %1279
        %v1282 = vmul.f32 %v1280, %v1276
        %v1283 = vpack.c.bf16 %v1266, %v1266
        %1284 = vrot.lane.b32.xlu0 %v933, 32
        %v1285 = vpop.permute.xlu0 %1284
        %v1288 = vsel %vm935, %v1283, 0
        %1290 = vmatprep.subr.bf16.mxu0 0
        %1291 = vmatpush1.bf16.msra.mxu0 %v1285
        %1292 = vmatprep.subr.bf16.mxu0 0
        %1293 = vmatpush1.bf16.msra.mxu0 0
        %1294 = vmatprep.subr.bf16.mxu0 0
        %1295 = vmatpush1.bf16.msra.mxu0 0
        %1296 = vmatprep.subr.bf16.mxu0 0
        %1297 = vmatpush1.bf16.msra.mxu0 0
        %1298 = vmatprep.subr.bf16.mxu0 0
        %1299 = vmatpush1.bf16.msra.mxu0 0
        %1300 = vmatprep.subr.bf16.mxu0 0
        %1301 = vmatpush1.bf16.msra.mxu0 0
        %1302 = vmatprep.subr.bf16.mxu0 0
        %1303 = vmatpush1.bf16.msra.mxu0 0
        %1304 = vmatprep.subr.bf16.mxu0 0
        %1305 = vmatpush1.bf16.msra.mxu0 0
        %1306 = vmatprep.subr.bf16.mxu0 0
        %1307 = vmatpush1.bf16.msra.mxu0 0
        %1308 = vmatprep.subr.bf16.mxu0 0
        %1309 = vmatpush1.bf16.msra.mxu0 0
        %1310 = vmatprep.subr.bf16.mxu0 0
        %1311 = vmatpush1.bf16.msra.mxu0 0
        %1312 = vmatprep.subr.bf16.mxu0 0
        %1313 = vmatpush1.bf16.msra.mxu0 0
        %1314 = vmatprep.subr.bf16.mxu0 0
        %1315 = vmatpush1.bf16.msra.mxu0 0
        %1316 = vmatprep.subr.bf16.mxu0 0
        %1317 = vmatpush1.bf16.msra.mxu0 0
        %1318 = vmatprep.subr.bf16.mxu0 0
        %1319 = vmatpush1.bf16.msra.mxu0 0
        %1320 = vmatprep.subr.bf16.mxu0 0
        %1321 = vmatpush1.bf16.msra.mxu0 0
        %1322 = vmatprep.mubr.bf16.mxu0 0
        %1323 = vmatmul.mubr.bf16.gmra.mrb[0].mxu0 %v1288
        %v1324 = vpop.f32.mrb[0].mxu0
        %v1325 = vadd.f32 0.0, %v1324
        %v1326 = vpop.f32.mrb[0].mxu0
        %v1327 = vpop.f32.mrb[0].mxu0
        %v1328 = vpop.f32.mrb[0].mxu0
        %1329 = vdwg.mxu0
        %v1330 = vadd.f32 %v1282, %v1325
        %1331 = vst.msk [vmem:[%s1275] sm:$0xff] %vm935, %v1330
        %1332 = vst.msk [vmem:[%s1250] sm:$0xff] %vm1004, %v1255
        %1333 = vrot.lane.b32.xlu0 %v1066, 80
        %v1334 = vpop.permute.xlu0 %1333
        %1335 = vrot.lane.b32.xlu0 %v933, 80
        %v1336 = vpop.permute.xlu0 %1335
        %v1338 = vsel %vm935, %v1334, 0
        %v1341 = vsel %vm935, %v1336, 0
        %1343 = vmatprep.subr.bf16.mxu0 0
        %1344 = vmatpush1.bf16.xpose.msra.mxu0 %v1341
        %1345 = vmatprep.subr.bf16.mxu0 0
        %1346 = vmatpush1.bf16.xpose.msra.mxu0 0
        %1347 = vmatprep.subr.bf16.mxu0 0
        %1348 = vmatpush1.bf16.xpose.msra.mxu0 0
        %1349 = vmatprep.subr.bf16.mxu0 0
        %1350 = vmatpush1.bf16.xpose.msra.mxu0 0
        %1351 = vmatprep.subr.bf16.mxu0 0
        %1352 = vmatpush1.bf16.xpose.msra.mxu0 0
        %1353 = vmatprep.subr.bf16.mxu0 0
        %1354 = vmatpush1.bf16.xpose.msra.mxu0 0
        %1355 = vmatprep.subr.bf16.mxu0 0
        %1356 = vmatpush1.bf16.xpose.msra.mxu0 0
        %1357 = vmatprep.subr.bf16.mxu0 0
        %1358 = vmatpush1.bf16.xpose.msra.mxu0 0
        %1359 = vmatprep.subr.bf16.mxu0 0
        %1360 = vmatpush1.bf16.xpose.msra.mxu0 0
        %1361 = vmatprep.subr.bf16.mxu0 0
        %1362 = vmatpush1.bf16.xpose.msra.mxu0 0
        %1363 = vmatprep.subr.bf16.mxu0 0
        %1364 = vmatpush1.bf16.xpose.msra.mxu0 0
        %1365 = vmatprep.subr.bf16.mxu0 0
        %1366 = vmatpush1.bf16.xpose.msra.mxu0 0
        %1367 = vmatprep.subr.bf16.mxu0 0
        %1368 = vmatpush1.bf16.xpose.msra.mxu0 0
        %1369 = vmatprep.subr.bf16.mxu0 0
        %1370 = vmatpush1.bf16.xpose.msra.mxu0 0
        %1371 = vmatprep.subr.bf16.mxu0 0
        %1372 = vmatpush1.bf16.xpose.msra.mxu0 0
        %1373 = vmatprep.subr.bf16.mxu0 0
        %1374 = vmatpush1.bf16.xpose.msra.mxu0 0
        %1375 = vmatprep.mubr.bf16.mxu0 0
        %1376 = vmatmul.mubr.bf16.gmra.mrb[0].mxu0 %v1338
        %v1377 = vpop.f32.mrb[0].mxu0
        %v1378 = vadd.f32 0.0, %v1377
        %v1379 = vpop.f32.mrb[0].mxu0
        %v1380 = vpop.f32.mrb[0].mxu0
        %v1381 = vpop.f32.mrb[0].mxu0
        %1382 = vdwg.mxu0
        %s1383 = scalar_lea.vmem [#allocation3], 24
        %v1384 = vld [vmem:[%s1383] sm:$0xff]
        %v1385 = vsel %vm935, %v1378, -inf
        %1386 = vmax.xlane.f32.xlu0 %v1385
        %v1387 = vpop.xlane.xlu0 %1386
        %v1388 = vmax.f32 %v1384, %v1387
        %v1389 = vsub.f32 %v1384, %v1388
        %v1390 = vmul.f32 %v1389, 1.442695
        %v1391 = vpow.pop %v1390
        %1393 = vset.pattern.permute.xlu0 0
        %1394 = vperm.xlu0 %1393, %v1388
        %v1395 = vpop.permute.xlu0 %1394
        %v1397 = vsub.f32 %v1378, %v1395
        %v1398 = vmul.f32 %v1397, 1.442695
        %v1399 = vpow.pop %v1398
        %s1400 = scalar_lea.vmem [#allocation4], 24
        %v1401 = vld [vmem:[%s1400] sm:$0xff]
        %v1402 = vmul.f32 %v1391, %v1401
        %v1403 = vsel %vm935, %v1399, 0.0
        %1404 = vadd.xlane.f32.xlu0 %v1403
        %v1405 = vpop.xlane.xlu0 %1404
        %v1406 = vadd.f32 %v1402, %v1405
        %1407 = vst.msk [vmem:[%s1400] sm:$0xff] %vm1004, %v1406
        %s1408 = scalar_lea.vmem [#allocation5], 24
        %v1409 = vld [vmem:[%s1408] sm:$0xff]
        %1411 = vset.pattern.permute.xlu0 0
        %1412 = vperm.xlu0 %1411, %v1391
        %v1413 = vpop.permute.xlu0 %1412
        %v1415 = vmul.f32 %v1413, %v1409
        %v1416 = vpack.c.bf16 %v1399, %v1399
        %1417 = vrot.lane.b32.xlu0 %v933, 16
        %v1418 = vpop.permute.xlu0 %1417
        %v1421 = vsel %vm935, %v1416, 0
        %1423 = vmatprep.subr.bf16.mxu0 0
        %1424 = vmatpush1.bf16.msra.mxu0 %v1418
        %1425 = vmatprep.subr.bf16.mxu0 0
        %1426 = vmatpush1.bf16.msra.mxu0 0
        %1427 = vmatprep.subr.bf16.mxu0 0
        %1428 = vmatpush1.bf16.msra.mxu0 0
        %1429 = vmatprep.subr.bf16.mxu0 0
        %1430 = vmatpush1.bf16.msra.mxu0 0
        %1431 = vmatprep.subr.bf16.mxu0 0
        %1432 = vmatpush1.bf16.msra.mxu0 0
        %1433 = vmatprep.subr.bf16.mxu0 0
        %1434 = vmatpush1.bf16.msra.mxu0 0
        %1435 = vmatprep.subr.bf16.mxu0 0
        %1436 = vmatpush1.bf16.msra.mxu0 0
        %1437 = vmatprep.subr.bf16.mxu0 0
        %1438 = vmatpush1.bf16.msra.mxu0 0
        %1439 = vmatprep.subr.bf16.mxu0 0
        %1440 = vmatpush1.bf16.msra.mxu0 0
        %1441 = vmatprep.subr.bf16.mxu0 0
        %1442 = vmatpush1.bf16.msra.mxu0 0
        %1443 = vmatprep.subr.bf16.mxu0 0
        %1444 = vmatpush1.bf16.msra.mxu0 0
        %1445 = vmatprep.subr.bf16.mxu0 0
        %1446 = vmatpush1.bf16.msra.mxu0 0
        %1447 = vmatprep.subr.bf16.mxu0 0
        %1448 = vmatpush1.bf16.msra.mxu0 0
        %1449 = vmatprep.subr.bf16.mxu0 0
        %1450 = vmatpush1.bf16.msra.mxu0 0
        %1451 = vmatprep.subr.bf16.mxu0 0
        %1452 = vmatpush1.bf16.msra.mxu0 0
        %1453 = vmatprep.subr.bf16.mxu0 0
        %1454 = vmatpush1.bf16.msra.mxu0 0
        %1455 = vmatprep.mubr.bf16.mxu0 0
        %1456 = vmatmul.mubr.bf16.gmra.mrb[0].mxu0 %v1421
        %v1457 = vpop.f32.mrb[0].mxu0
        %v1458 = vadd.f32 0.0, %v1457
        %v1459 = vpop.f32.mrb[0].mxu0
        %v1460 = vpop.f32.mrb[0].mxu0
        %v1461 = vpop.f32.mrb[0].mxu0
        %1462 = vdwg.mxu0
        %v1463 = vadd.f32 %v1415, %v1458
        %1464 = vst.msk [vmem:[%s1408] sm:$0xff] %vm935, %v1463
        %1465 = vst.msk [vmem:[%s1383] sm:$0xff] %vm1004, %v1388
        // Predicated region
        $region49: #{tpu_custom_call.1} parent=39 // pred_check
          %p1466 = pneg %p293
        $region50: #{tpu_custom_call.1} parent=39 // pred_check_branch
          %1468 = sbr.rel (%p1466) target = $region52
        $region51: #{tpu_custom_call.1} parent=39 // pred_region
          %v1469 = vld [vmem:[#allocation4] sm:$0xff]
          %v1470 = vrcp.pop %v1469
          %v1471 = vld [vmem:[#allocation5] sm:$0xff]
          %1473 = vset.pattern.permute.xlu0 0
          %1474 = vperm.xlu0 %1473, %v1470
          %v1475 = vpop.permute.xlu0 %1474
          %v1477 = vmul.f32 %v1471, %v1475
          %v1478 = vpack.c.bf16 %v1477, %v1477
          %v1479 = vld [vmem:[%s1134] sm:$0xff]
          %v1480 = vrcp.pop %v1479
          %v1481 = vld [vmem:[%s1142] sm:$0xff]
          %1483 = vset.pattern.permute.xlu0 0
          %1484 = vperm.xlu0 %1483, %v1480
          %v1485 = vpop.permute.xlu0 %1484
          %v1487 = vmul.f32 %v1481, %v1485
          %v1488 = vpack.c.bf16 %v1487, %v1487
          %v1489 = vld [vmem:[%s1267] sm:$0xff]
          %v1490 = vrcp.pop %v1489
          %v1491 = vld [vmem:[%s1275] sm:$0xff]
          %1493 = vset.pattern.permute.xlu0 0
          %1494 = vperm.xlu0 %1493, %v1490
          %v1495 = vpop.permute.xlu0 %1494
          %v1497 = vmul.f32 %v1491, %v1495
          %v1498 = vpack.c.bf16 %v1497, %v1497
          %v1499 = vld [vmem:[%s1400] sm:$0xff]
          %v1500 = vrcp.pop %v1499
          %v1501 = vld [vmem:[%s1408] sm:$0xff]
          %1503 = vset.pattern.permute.xlu0 0
          %1504 = vperm.xlu0 %1503, %v1500
          %v1505 = vpop.permute.xlu0 %1504
          %v1507 = vmul.f32 %v1501, %v1505
          %v1508 = vpack.c.bf16 %v1507, %v1507
          %1510 = vrot.lane.b32.xlu0 %v1488, 16
          %v1511 = vpop.permute.xlu0 %1510
          %1513 = vrot.lane.b32.xlu0 %v1498, 32
          %v1514 = vpop.permute.xlu0 %1513
          %1516 = vrot.lane.b32.xlu0 %v1508, 48
          %v1517 = vpop.permute.xlu0 %1516
          %v1520 = vsel %vm935, %v1478, %v1511
          %v1522 = vsel %vm888, %v1520, %v1514
          %vm1523 = vcmask 392192
          %v1525 = vsel %vm1523, %v1522, %v1517
          %v1526 = vld [vmem:[%s4] sm:$0xf]
          %v1527 = vld [vmem:[%s4 + $0x4] sm:$0xf]
          %v1528 = vld [vmem:[%s4 + $0x8] sm:$0xf]
          %v1529 = vld [vmem:[%s4 + $0xc] sm:$0xf]
          %v1530 = vld [vmem:[%s4 + $0x10] sm:$0xf]
          %v1531 = vld [vmem:[%s4 + $0x14] sm:$0xf]
          %v1532 = vld [vmem:[%s4 + $0x18] sm:$0xf]
          %v1533 = vld [vmem:[%s4 + $0x1c] sm:$0xf]
          %v1542 = vunpack.c.l.b16 %v1526
          %v1543 = vunpack.c.l.b16 %v1527
          %v1544 = vunpack.c.l.b16 %v1528
          %v1545 = vunpack.c.l.b16 %v1529
          %v1546 = vunpack.c.l.b16 %v1530
          %v1547 = vunpack.c.l.b16 %v1531
          %v1548 = vunpack.c.l.b16 %v1532
          %v1549 = vunpack.c.l.b16 %v1533
          %v1550 = vpack.c.b16 %v1543, %v1542
          %v1551 = vpack.c.b16 %v1545, %v1544
          %v1552 = vpack.c.b16 %v1547, %v1546
          %v1553 = vpack.c.b16 %v1549, %v1548
          %vm1558 = vcmask 523264
          %v1559 = vsel %vm1558, %v1525, 0
          %1561 = vmatprep.subr.bf16.mxu0 0
          %1562 = vmatpush1.bf16.msra.mxu0 %v1550
          %1563 = vmatprep.subr.bf16.mxu0 0
          %1564 = vmatpush1.bf16.msra.mxu0 %v1551
          %1565 = vmatprep.subr.bf16.mxu0 0
          %1566 = vmatpush1.bf16.msra.mxu0 %v1552
          %1567 = vmatprep.subr.bf16.mxu0 0
          %1568 = vmatpush1.bf16.msra.mxu0 %v1553
          %1569 = vmatprep.subr.bf16.mxu0 0
          %1570 = vmatpush1.bf16.msra.mxu0 0
          %1571 = vmatprep.subr.bf16.mxu0 0
          %1572 = vmatpush1.bf16.msra.mxu0 0
          %1573 = vmatprep.subr.bf16.mxu0 0
          %1574 = vmatpush1.bf16.msra.mxu0 0
          %1575 = vmatprep.subr.bf16.mxu0 0
          %1576 = vmatpush1.bf16.msra.mxu0 0
          %1577 = vmatprep.subr.bf16.mxu0 0
          %1578 = vmatpush1.bf16.msra.mxu0 0
          %1579 = vmatprep.subr.bf16.mxu0 0
          %1580 = vmatpush1.bf16.msra.mxu0 0
          %1581 = vmatprep.subr.bf16.mxu0 0
          %1582 = vmatpush1.bf16.msra.mxu0 0
          %1583 = vmatprep.subr.bf16.mxu0 0
          %1584 = vmatpush1.bf16.msra.mxu0 0
          %1585 = vmatprep.subr.bf16.mxu0 0
          %1586 = vmatpush1.bf16.msra.mxu0 0
          %1587 = vmatprep.subr.bf16.mxu0 0
          %1588 = vmatpush1.bf16.msra.mxu0 0
          %1589 = vmatprep.subr.bf16.mxu0 0
          %1590 = vmatpush1.bf16.msra.mxu0 0
          %1591 = vmatprep.subr.bf16.mxu0 0
          %1592 = vmatpush1.bf16.msra.mxu0 0
          %1593 = vmatprep.mubr.bf16.mxu0 0
          %1594 = vmatmul.mubr.bf16.gmra.mrb[0].mxu0 %v1559
          %v1595 = vpop.f32.mrb[0].mxu0
          %v1596 = vadd.f32 0.0, %v1595
          %v1597 = vpop.f32.mrb[0].mxu0
          %v1598 = vpop.f32.mrb[0].mxu0
          %v1599 = vpop.f32.mrb[0].mxu0
          %1600 = vdwg.mxu0
          %v1601 = vpack.c.bf16 %v1596, %v1596
          %vm1602 = vcmask 257024
          %1603 = vst.msk [vmem:[%s277] sm:$0xf] %vm1602, %v1601
        $region52: #{tpu_custom_call.1} parent=39 // pred_fallthru
          _
        %s1604 = sand.u32 %s159, 1
        %s1605 = scalar_lea.sflag [#allocation8], %s1604
        %s1606 = sand.u32 %s159, 1
        %s1607 = smul.addr %s1606, 4
        %s1608 = scalar_lea.vmem [#allocation9], %s1607
        // Predicated region
        $region53: #{tpu_custom_call.1} parent=39 // pred_check
          %p1609 = pneg %p169
        $region54: #{tpu_custom_call.1} parent=39 // pred_check_branch
          %1611 = sbr.rel (%p1609) target = $region56
        $region55: #{tpu_custom_call.1} parent=39 // pred_region
          %s1613 = ssub.s32 64, 64
          %1614 = vsyncadd %s1605, %s1613
          %s1615 = smul.addr %s26, 64
          %s1616 = scalar_lea.hbm %s5, %s1615
          %s1618 = sshll.u32 %s1608, 4
          %s1619 = int_to_ptr.vmem [resolvable:$true] %s1618
          %1621 = dma.vmem_to_hbm [thread:$0]  %s1619, 64, %s1616, %s1605
        $region56: #{tpu_custom_call.1} parent=39 // pred_fallthru
          _
      $region40: #{tpu_custom_call.1} parent=5 // pred_fallthru
        _
      %p1622 = scmp.le.s32.totalorder 2, %s17
      // Predicated region
      $region57: #{tpu_custom_call.1} parent=5 // pred_check
        %p1623 = pneg %p1622
      $region58: #{tpu_custom_call.1} parent=5 // pred_check_branch
        %1625 = sbr.rel (%p1623) target = $region60
      $region59: #{tpu_custom_call.1} parent=5 // pred_region
        %s1626 = ssub.s32 %s17, 2
        // Predicated region
        $region61: #{tpu_custom_call.1} parent=59 // pred_check
          %p1627 = pneg %p175
        $region62: #{tpu_custom_call.1} parent=59 // pred_check_branch
          %1629 = sbr.rel (%p1627) target = $region64
        $region63: #{tpu_custom_call.1} parent=59 // pred_region
          %s1630 = sand.u32 %s160, 1
          %s1631 = scalar_lea.sflag [#allocation8], %s1630
          %s1632 = sand.u32 %s160, 1
          %s1633 = smul.addr %s1632, 4
          %s1634 = scalar_lea.vmem [#allocation9], %s1633
          %1635 = dma.done %s1631, 64
        $region64: #{tpu_custom_call.1} parent=59 // pred_fallthru
          _
      $region60: #{tpu_custom_call.1} parent=5 // pred_fallthru
        _
    $region6: #{tpu_custom_call.1} parent=1 // loop_footer
      %s21 = sadd.s32 1, %s17
    $region7: #{tpu_custom_call.1} parent=1 // loop_footer_branch
      %16 = sbr.rel target = $region3
    $region8: #{tpu_custom_call.1} parent=1 // loop_exit
      _
    %1636 = vsyncpa [#allocation7], 1
    %s1637 = scalar_lea.sflag [#allocation7], 1
    %1638 = vsyncpa %s1637, 1
    %1639 = vsyncpa [#allocation8], 1
    %s1640 = scalar_lea.sflag [#allocation8], 1
    %1641 = vsyncpa %s1640, 1

</llo_original>
